<compile_context>
chip_gen: v7x
topology: tpu7x:2x2x1
jax: 0.10.0
libtpu: 0.0.40
codegen_flags: <defaults>
</compile_context>

<pallas_src>
import functools
import numpy as np

import jax
import jax.numpy as jnp
from jax.experimental import pallas as pl
from jax.experimental.pallas import tpu as pltpu


def _layernorm(v, w, b, eps=1e-5):
    # PyTorch nn.LayerNorm: biased variance, eps inside the sqrt.
    # One-pass statistics: var = E[x^2] - E[x]^2 (two independent lane
    # reductions instead of a dependent centered second reduction).
    mu = jnp.mean(v, axis=-1, keepdims=True)
    ms = jnp.mean(v * v, axis=-1, keepdims=True)
    var = ms - mu * mu
    return (v - mu) * jax.lax.rsqrt(var + eps) * w + b


def _gelu_exact(v):
    # nn.GELU() default is the exact erf formulation (kept for parity with
    # the PyTorch module; tanh-approx would move work to the EUP but changes
    # numerics).
    return 0.5 * v * (1.0 + jax.lax.erf(v * (1.0 / float(np.sqrt(2.0)))))


def transformer_block_kernel(
    x_ref,
    ln1w_ref, ln1b_ref,
    wq_ref, bq_ref, wk_ref, bk_ref, wv_ref, bv_ref, wo_ref, bo_ref,
    ln2w_ref, ln2b_ref,
    w1_ref, b1_ref, w2_ref, b2_ref,
    o_ref,
    pv_ref,                         # bf16 VMEM staging: concat(heads) (bt*nx, c)
    *, num_heads, bt, nx,
):
    m, c = x_ref.shape              # m = bt * nx rows, c = d_model lanes
    dh = c // num_heads             # per-head dim (== self.d_k)
    scale = 1.0 / float(np.sqrt(dh))

    xf = x_ref[...].astype(jnp.float32)                  # (m, c)

    # --- x + SelfAttention(LayerNorm(x)) ---------------------------------
    ln1_b = _layernorm(xf, ln1w_ref[0], ln1b_ref[0]).astype(jnp.bfloat16)

    # Weights arrive pre-transposed (in, out) in bf16 -> plain x @ W.
    # Bias added inside the f32 accumulate, cast straight to bf16 (no f32
    # q/k/v kept live).
    q3 = (jnp.dot(ln1_b, wq_ref[...], preferred_element_type=jnp.float32)
          + bq_ref[0]).astype(jnp.bfloat16).reshape(bt, nx, c)
    k3 = (jnp.dot(ln1_b, wk_ref[...], preferred_element_type=jnp.float32)
          + bk_ref[0]).astype(jnp.bfloat16).reshape(bt, nx, c)
    v3 = (jnp.dot(ln1_b, wv_ref[...], preferred_element_type=jnp.float32)
          + bv_ref[0]).astype(jnp.bfloat16).reshape(bt, nx, c)

    for hd in range(num_heads):                          # static unroll over heads
        lo = hd * dh
        qh = q3[:, :, lo:lo + dh]                        # (bt, nx, dh)
        kh = k3[:, :, lo:lo + dh]
        vh = v3[:, :, lo:lo + dh]

        # scores = q @ k^T (trans_b fed to the MXU, no materialized transpose)
        s = jax.lax.dot_general(
            qh, kh, (((2,), (2,)), ((0,), (0,))),
            preferred_element_type=jnp.float32) * scale  # (bt, nx, nx)
        s = s - jnp.max(s, axis=-1, keepdims=True)
        e = jnp.exp(s)
        p = e * pl.reciprocal(jnp.sum(e, axis=-1, keepdims=True), approx=True)

        pv = jax.lax.dot_general(
            p.astype(jnp.bfloat16), vh, (((2,), (1,)), ((0,), (0,))),
            preferred_element_type=jnp.float32)          # (bt, nx, dh)

        # Stage this head's output at its lane offset (head-order concat).
        pv_ref[:, lo:lo + dh] = pv.reshape(m, dh).astype(jnp.bfloat16)

    # Single output-projection GEMM with K = c (instead of H GEMMs with K=dh).
    sa = jnp.dot(pv_ref[...], wo_ref[...],
                 preferred_element_type=jnp.float32) + bo_ref[0]
    # attn_drop / resid_drop are identity in eval mode.
    x1 = xf + sa

    # --- x + MLP(LayerNorm(x)) -------------------------------------------
    ln2_b = _layernorm(x1, ln2w_ref[0], ln2b_ref[0]).astype(jnp.bfloat16)
    hmid = jnp.dot(ln2_b, w1_ref[...],
                   preferred_element_type=jnp.float32) + b1_ref[0]
    hmid = _gelu_exact(hmid)
    mlp = jnp.dot(hmid.astype(jnp.bfloat16), w2_ref[...],
                  preferred_element_type=jnp.float32) + b2_ref[0]
    # MLP Dropout is identity in eval mode.

    o_ref[...] = (x1 + mlp).astype(o_ref.dtype)


def prepare_params(params):
    """Pre-transpose GEMM weights (kernel computes x @ W) and cast to bf16.

    Call ONCE per parameter set and reuse the returned list across forward
    calls (hoists the HBM transposes out of the forward path)."""
    f32, bf16 = jnp.float32, jnp.bfloat16
    t = lambda w: jnp.asarray(w).T.astype(bf16)
    v = lambda p: jnp.asarray(p).astype(f32)
    return [
        v(params["ln1_w"]), v(params["ln1_b"]),
        t(params["wq"]), v(params["bq"]),
        t(params["wk"]), v(params["bk"]),
        t(params["wv"]), v(params["bv"]),
        t(params["wo"]), v(params["bo"]),
        v(params["ln2_w"]), v(params["ln2_b"]),
        t(params["w1"]), v(params["b1"]),
        t(params["w2"]), v(params["b2"]),
    ]


def _pick_batch_tile(bs, nx, min_steps=1, target_rows=512):
    """Largest batch tile whose GEMM M (~bt*nx rows) stays near target_rows.

    min_steps=1 by default: v5e/v6e have a single TensorCore, so splitting the
    batch only shrinks the MXU M tile.  Pass min_steps=2 on v7x to let the
    'parallel' grid axis shard across its two TensorCores."""
    cap = max(1, target_rows // max(nx, 1))
    best = 1
    for bt in range(1, bs + 1):
        if bs % bt:
            continue
        steps = bs // bt
        if bt <= cap and (steps >= min_steps or bt == 1):
            best = bt
    return best


def _vmem_limit_bytes(bt, nx, c, hdim, param_list):
    weight = sum(int(np.prod(p.shape)) * p.dtype.itemsize for p in param_list)
    m = bt * nx
    io = 2 * 2 * m * c * 4                     # x in + out blocks, 2-deep pipeline
    act = m * (10 * c + 3 * hdim) * 4          # LN / QKV / MLP intermediates (rough)
    scores = 2 * bt * nx * nx * 4              # per-head scores + exp (f32)
    est = weight + io + act + scores
    return int(min(96 * 2**20, max(32 * 2**20, 2 * est)))


def transformer_block(x, params, num_heads, *, batch_tile=None, min_grid_steps=1):
    """x: (bs, nx, d_model).  params: dict (see init_params) or the list
    returned by prepare_params."""
    bs, nx, c = x.shape
    assert c % num_heads == 0

    param_list = prepare_params(params) if isinstance(params, dict) else list(params)

    if batch_tile is None:
        batch_tile = _pick_batch_tile(bs, nx, min_steps=min_grid_steps)
    bt = batch_tile
    assert bs % bt == 0
    if (bt * nx) % 8 != 0 and bt != bs:
        bt = bs                                 # keep the row-block sublane-tileable
    m = bt * nx
    hdim = param_list[12].shape[1]              # w1^T is (c, hdim)

    # 2-D (bs*nx, c) slab at the boundary: the kernel works row-major anyway,
    # so the block is exactly the GEMM operand (no in-kernel batch reshapes).
    x2d = x.reshape(bs * nx, c)

    def _const_spec(p):
        nd = p.ndim
        # Weights/biases never change across the grid -> single-buffer them
        # (default double-buffering would keep a second resident copy of
        # every weight in VMEM for no benefit).
        return pl.BlockSpec(p.shape, lambda b, _nd=nd: (0,) * _nd,
                            pipeline_mode=pl.Buffered(1))

    in_specs = [pl.BlockSpec((m, c), lambda b: (b, 0))]
    in_specs += [_const_spec(p) for p in param_list]

    kernel = functools.partial(transformer_block_kernel,
                               num_heads=num_heads, bt=bt, nx=nx)

    out2d = pl.pallas_call(
        kernel,
        out_shape=jax.ShapeDtypeStruct((bs * nx, c), x.dtype),
        grid_spec=pltpu.PrefetchScalarGridSpec(
            num_scalar_prefetch=0,
            grid=(bs // bt,),
            in_specs=in_specs,
            out_specs=pl.BlockSpec((m, c), lambda b: (b, 0)),
            scratch_shapes=[pltpu.VMEM((m, c), jnp.bfloat16)],
        ),
        compiler_params=pltpu.CompilerParams(
            dimension_semantics=("parallel",),
            vmem_limit_bytes=_vmem_limit_bytes(bt, nx, c, hdim, param_list),
        ),
    )(x2d, *param_list)
    return out2d.reshape(bs, nx, c)


def init_params(key, d_model, block_exp):
    """Deterministic synthetic parameters (shapes follow the PyTorch module)."""
    ks = jax.random.split(key, 16)
    f32 = jnp.float32
    std = 0.05

    def normal(k, shape, s=std):
        return (s * jax.random.normal(k, shape)).astype(f32)

    hdim = block_exp * d_model
    return {
        # LayerNorms (weight ~ 1, bias small)
        "ln1_w": (1.0 + normal(ks[0], (1, d_model))),
        "ln1_b": normal(ks[1], (1, d_model)),
        "ln2_w": (1.0 + normal(ks[2], (1, d_model))),
        "ln2_b": normal(ks[3], (1, d_model)),
        # SelfAttention projections (PyTorch Linear: W is (out, in), y = x W^T + b)
        "wq": normal(ks[4], (d_model, d_model)),
        "bq": normal(ks[5], (1, d_model)),
        "wk": normal(ks[6], (d_model, d_model)),
        "bk": normal(ks[7], (1, d_model)),
        "wv": normal(ks[8], (d_model, d_model)),
        "bv": normal(ks[9], (1, d_model)),
        "wo": normal(ks[10], (d_model, d_model)),
        "bo": normal(ks[11], (1, d_model)),
        # MLP
        "w1": normal(ks[12], (hdim, d_model)),
        "b1": normal(ks[13], (1, hdim)),
        "w2": normal(ks[14], (d_model, hdim)),
        "b2": normal(ks[15], (1, d_model)),
    }


def transformer_block_reference(x, p, num_heads):
    """Pure-JAX reference reproducing the PyTorch forward (eval mode, f32)."""
    bs, nx, c = x.shape
    dh = c // num_heads

    def ln(v, w, b):
        mu = jnp.mean(v, axis=-1, keepdims=True)
        var = jnp.mean((v - mu) ** 2, axis=-1, keepdims=True)
        return (v - mu) / jnp.sqrt(var + 1e-5) * w[0] + b[0]

    h1 = ln(x, p["ln1_w"], p["ln1_b"])
    q = h1 @ p["wq"].T + p["bq"][0]
    k = h1 @ p["wk"].T + p["bk"][0]
    v = h1 @ p["wv"].T + p["bv"][0]
    q = q.reshape(bs, nx, num_heads, dh).transpose(0, 2, 1, 3)
    k = k.reshape(bs, nx, num_heads, dh).transpose(0, 2, 3, 1)
    v = v.reshape(bs, nx, num_heads, dh).transpose(0, 2, 1, 3)
    att = jnp.matmul(q, k) / np.sqrt(dh)
    att = jax.nn.softmax(att, axis=-1)
    out = jnp.matmul(att, v).transpose(0, 2, 1, 3).reshape(bs, nx, c)
    out = out @ p["wo"].T + p["bo"][0]
    x = x + out
    h2 = ln(x, p["ln2_w"], p["ln2_b"])
    m = h2 @ p["w1"].T + p["b1"][0]
    m = jax.nn.gelu(m, approximate=False)
    m = m @ p["w2"].T + p["b2"][0]
    return x + m


if __name__ == "__main__":
    # Small shapes consistent with the module: tokens = H*W = 16, d_model = 32.
    bs, nx, d_model, num_heads, block_exp = 2, 16, 32, 4, 4

    key = jax.random.PRNGKey(0)
    kx, kp = jax.random.split(key)
    x = jax.random.normal(kx, (bs, nx, d_model), dtype=jnp.float32)
    params = init_params(kp, d_model, block_exp)

    prepared = prepare_params(params)           # one-time weight prep (hoisted)
    out = transformer_block(x, prepared, num_heads)
    out = jax.block_until_ready(out)

    ref = jax.block_until_ready(transformer_block_reference(x, params, num_heads))
    # Tolerance relaxed: matmul operands run in bf16 (f32 accumulation) and
    # the softmax denominator uses the EUP approx reciprocal.
    if not np.allclose(np.asarray(out), np.asarray(ref), rtol=2e-2, atol=2e-2):
        err = np.max(np.abs(np.asarray(out) - np.asarray(ref)))
        raise AssertionError(f"Pallas kernel does not match JAX reference (max abs err {err})")

    print("KERNEL_OK")
</pallas_src>

<mosaic_0001>
module attributes {stable_mosaic.version = 11 : i64} {
  func.func @transformer_block_kernel(%arg0: i32, %arg1: memref<32x32xf32, #tpu.memory_space<vmem>>, %arg2: memref<1x32xf32, #tpu.memory_space<vmem>>, %arg3: memref<1x32xf32, #tpu.memory_space<vmem>>, %arg4: memref<32x32xbf16, #tpu.memory_space<vmem>>, %arg5: memref<1x32xf32, #tpu.memory_space<vmem>>, %arg6: memref<32x32xbf16, #tpu.memory_space<vmem>>, %arg7: memref<1x32xf32, #tpu.memory_space<vmem>>, %arg8: memref<32x32xbf16, #tpu.memory_space<vmem>>, %arg9: memref<1x32xf32, #tpu.memory_space<vmem>>, %arg10: memref<32x32xbf16, #tpu.memory_space<vmem>>, %arg11: memref<1x32xf32, #tpu.memory_space<vmem>>, %arg12: memref<1x32xf32, #tpu.memory_space<vmem>>, %arg13: memref<1x32xf32, #tpu.memory_space<vmem>>, %arg14: memref<32x128xbf16, #tpu.memory_space<vmem>>, %arg15: memref<1x128xf32, #tpu.memory_space<vmem>>, %arg16: memref<128x32xbf16, #tpu.memory_space<vmem>>, %arg17: memref<1x32xf32, #tpu.memory_space<vmem>>, %arg18: memref<32x32xf32, #tpu.memory_space<vmem>>, %arg19: memref<32x32xbf16, #tpu.memory_space<vmem>>) attributes {dimension_semantics = [#tpu.dimension_semantics<parallel>], iteration_bounds = array<i64: 1>, scalar_prefetch = 0 : i64, scratch_operands = 1 : i64, tpu.core_type = #tpu.core_type<tc>, window_params = [{transform_indices = @transform_0, window_bounds = array<i64: 32, 32>}, {pipeline_mode = #tpu.pipeline_mode<synchronous>, transform_indices = @transform_1, window_bounds = array<i64: 1, 32>}, {pipeline_mode = #tpu.pipeline_mode<synchronous>, transform_indices = @transform_2, window_bounds = array<i64: 1, 32>}, {pipeline_mode = #tpu.pipeline_mode<synchronous>, transform_indices = @transform_3, window_bounds = array<i64: 32, 32>}, {pipeline_mode = #tpu.pipeline_mode<synchronous>, transform_indices = @transform_4, window_bounds = array<i64: 1, 32>}, {pipeline_mode = #tpu.pipeline_mode<synchronous>, transform_indices = @transform_5, window_bounds = array<i64: 32, 32>}, {pipeline_mode = #tpu.pipeline_mode<synchronous>, transform_indices = @transform_6, window_bounds = array<i64: 1, 32>}, {pipeline_mode = #tpu.pipeline_mode<synchronous>, transform_indices = @transform_7, window_bounds = array<i64: 32, 32>}, {pipeline_mode = #tpu.pipeline_mode<synchronous>, transform_indices = @transform_8, window_bounds = array<i64: 1, 32>}, {pipeline_mode = #tpu.pipeline_mode<synchronous>, transform_indices = @transform_9, window_bounds = array<i64: 32, 32>}, {pipeline_mode = #tpu.pipeline_mode<synchronous>, transform_indices = @transform_10, window_bounds = array<i64: 1, 32>}, {pipeline_mode = #tpu.pipeline_mode<synchronous>, transform_indices = @transform_11, window_bounds = array<i64: 1, 32>}, {pipeline_mode = #tpu.pipeline_mode<synchronous>, transform_indices = @transform_12, window_bounds = array<i64: 1, 32>}, {pipeline_mode = #tpu.pipeline_mode<synchronous>, transform_indices = @transform_13, window_bounds = array<i64: 32, 128>}, {pipeline_mode = #tpu.pipeline_mode<synchronous>, transform_indices = @transform_14, window_bounds = array<i64: 1, 128>}, {pipeline_mode = #tpu.pipeline_mode<synchronous>, transform_indices = @transform_15, window_bounds = array<i64: 128, 32>}, {pipeline_mode = #tpu.pipeline_mode<synchronous>, transform_indices = @transform_16, window_bounds = array<i64: 1, 32>}, {transform_indices = @transform_17, window_bounds = array<i64: 32, 32>}]} {
    %c0 = arith.constant 0 : index
    %c0_0 = arith.constant 0 : index
    %0 = vector.load %arg1[%c0, %c0_0] : memref<32x32xf32, #tpu.memory_space<vmem>>, vector<32x32xf32>
    %c0_1 = arith.constant 0 : index
    %c0_2 = arith.constant 0 : index
    %1 = vector.load %arg2[%c0_1, %c0_2] : memref<1x32xf32, #tpu.memory_space<vmem>>, vector<1x32xf32>
    %2 = vector.shape_cast %1 : vector<1x32xf32> to vector<32xf32>
    %c0_3 = arith.constant 0 : index
    %c0_4 = arith.constant 0 : index
    %3 = vector.load %arg3[%c0_3, %c0_4] : memref<1x32xf32, #tpu.memory_space<vmem>>, vector<1x32xf32>
    %4 = vector.shape_cast %3 : vector<1x32xf32> to vector<32xf32>
    %cst = arith.constant dense<0.000000e+00> : vector<32xf32>
    %5 = vector.multi_reduction <add>, %0, %cst [1] : vector<32x32xf32> to vector<32xf32>
    %6 = vector.shape_cast %5 : vector<32xf32> to vector<32x1xf32>
    %cst_5 = arith.constant 3.200000e+01 : f32
    %7 = vector.broadcast %cst_5 : f32 to vector<32x1xf32>
    %8 = arith.divf %6, %7 : vector<32x1xf32>
    %9 = arith.mulf %0, %0 : vector<32x32xf32>
    %cst_6 = arith.constant dense<0.000000e+00> : vector<32xf32>
    %10 = vector.multi_reduction <add>, %9, %cst_6 [1] : vector<32x32xf32> to vector<32xf32>
    %11 = vector.shape_cast %10 : vector<32xf32> to vector<32x1xf32>
    %cst_7 = arith.constant 3.200000e+01 : f32
    %12 = vector.broadcast %cst_7 : f32 to vector<32x1xf32>
    %13 = arith.divf %11, %12 : vector<32x1xf32>
    %14 = arith.mulf %8, %8 : vector<32x1xf32>
    %15 = arith.subf %13, %14 : vector<32x1xf32>
    %16 = vector.broadcast %8 : vector<32x1xf32> to vector<32x32xf32>
    %17 = arith.subf %0, %16 : vector<32x32xf32>
    %cst_8 = arith.constant 9.99999974E-6 : f32
    %18 = vector.broadcast %cst_8 : f32 to vector<32x1xf32>
    %19 = arith.addf %15, %18 : vector<32x1xf32>
    %20 = math.rsqrt %19 : vector<32x1xf32>
    %21 = vector.broadcast %20 : vector<32x1xf32> to vector<32x32xf32>
    %22 = arith.mulf %17, %21 : vector<32x32xf32>
    %23 = vector.shape_cast %2 : vector<32xf32> to vector<1x32xf32>
    %24 = vector.broadcast %23 : vector<1x32xf32> to vector<32x32xf32>
    %25 = arith.mulf %22, %24 : vector<32x32xf32>
    %26 = vector.shape_cast %4 : vector<32xf32> to vector<1x32xf32>
    %27 = vector.broadcast %26 : vector<1x32xf32> to vector<32x32xf32>
    %28 = arith.addf %25, %27 : vector<32x32xf32>
    %29 = arith.truncf %28 : vector<32x32xf32> to vector<32x32xbf16>
    %c0_9 = arith.constant 0 : index
    %c0_10 = arith.constant 0 : index
    %30 = vector.load %arg4[%c0_9, %c0_10] : memref<32x32xbf16, #tpu.memory_space<vmem>>, vector<32x32xbf16>
    %cst_11 = arith.constant dense<0.000000e+00> : vector<32x32xf32>
    %31 = tpu.matmul %29, %30, %cst_11 {dimension_numbers = #tpu.dot_dimension_numbers<[1], [0], [0], [1], [0, 0, 1, 1], [], []>} : vector<32x32xbf16>, vector<32x32xbf16>, vector<32x32xf32> -> vector<32x32xf32>
    %c0_12 = arith.constant 0 : index
    %c0_13 = arith.constant 0 : index
    %32 = vector.load %arg5[%c0_12, %c0_13] : memref<1x32xf32, #tpu.memory_space<vmem>>, vector<1x32xf32>
    %33 = vector.shape_cast %32 : vector<1x32xf32> to vector<32xf32>
    %34 = vector.shape_cast %33 : vector<32xf32> to vector<1x32xf32>
    %35 = vector.broadcast %34 : vector<1x32xf32> to vector<32x32xf32>
    %36 = arith.addf %31, %35 : vector<32x32xf32>
    %37 = arith.truncf %36 : vector<32x32xf32> to vector<32x32xbf16>
    %38 = vector.shape_cast %37 : vector<32x32xbf16> to vector<2x16x32xbf16>
    %c0_14 = arith.constant 0 : index
    %c0_15 = arith.constant 0 : index
    %39 = vector.load %arg6[%c0_14, %c0_15] : memref<32x32xbf16, #tpu.memory_space<vmem>>, vector<32x32xbf16>
    %cst_16 = arith.constant dense<0.000000e+00> : vector<32x32xf32>
    %40 = tpu.matmul %29, %39, %cst_16 {dimension_numbers = #tpu.dot_dimension_numbers<[1], [0], [0], [1], [0, 0, 1, 1], [], []>} : vector<32x32xbf16>, vector<32x32xbf16>, vector<32x32xf32> -> vector<32x32xf32>
    %c0_17 = arith.constant 0 : index
    %c0_18 = arith.constant 0 : index
    %41 = vector.load %arg7[%c0_17, %c0_18] : memref<1x32xf32, #tpu.memory_space<vmem>>, vector<1x32xf32>
    %42 = vector.shape_cast %41 : vector<1x32xf32> to vector<32xf32>
    %43 = vector.shape_cast %42 : vector<32xf32> to vector<1x32xf32>
    %44 = vector.broadcast %43 : vector<1x32xf32> to vector<32x32xf32>
    %45 = arith.addf %40, %44 : vector<32x32xf32>
    %46 = arith.truncf %45 : vector<32x32xf32> to vector<32x32xbf16>
    %47 = vector.shape_cast %46 : vector<32x32xbf16> to vector<2x16x32xbf16>
    %c0_19 = arith.constant 0 : index
    %c0_20 = arith.constant 0 : index
    %48 = vector.load %arg8[%c0_19, %c0_20] : memref<32x32xbf16, #tpu.memory_space<vmem>>, vector<32x32xbf16>
    %cst_21 = arith.constant dense<0.000000e+00> : vector<32x32xf32>
    %49 = tpu.matmul %29, %48, %cst_21 {dimension_numbers = #tpu.dot_dimension_numbers<[1], [0], [0], [1], [0, 0, 1, 1], [], []>} : vector<32x32xbf16>, vector<32x32xbf16>, vector<32x32xf32> -> vector<32x32xf32>
    %c0_22 = arith.constant 0 : index
    %c0_23 = arith.constant 0 : index
    %50 = vector.load %arg9[%c0_22, %c0_23] : memref<1x32xf32, #tpu.memory_space<vmem>>, vector<1x32xf32>
    %51 = vector.shape_cast %50 : vector<1x32xf32> to vector<32xf32>
    %52 = vector.shape_cast %51 : vector<32xf32> to vector<1x32xf32>
    %53 = vector.broadcast %52 : vector<1x32xf32> to vector<32x32xf32>
    %54 = arith.addf %49, %53 : vector<32x32xf32>
    %55 = arith.truncf %54 : vector<32x32xf32> to vector<32x32xbf16>
    %56 = vector.shape_cast %55 : vector<32x32xbf16> to vector<2x16x32xbf16>
    %57 = vector.extract_strided_slice %38 {offsets = [0, 0, 0], sizes = [2, 16, 8], strides = [1, 1, 1]} : vector<2x16x32xbf16> to vector<2x16x8xbf16>
    %58 = vector.extract_strided_slice %47 {offsets = [0, 0, 0], sizes = [2, 16, 8], strides = [1, 1, 1]} : vector<2x16x32xbf16> to vector<2x16x8xbf16>
    %59 = vector.extract_strided_slice %56 {offsets = [0, 0, 0], sizes = [2, 16, 8], strides = [1, 1, 1]} : vector<2x16x32xbf16> to vector<2x16x8xbf16>
    %cst_24 = arith.constant dense<0.000000e+00> : vector<2x16x16xf32>
    %60 = tpu.matmul %57, %58, %cst_24 {dimension_numbers = #tpu.dot_dimension_numbers<[2], [2], [1], [1], [0, 0, 0, 1, 1, 1], [0], [0]>} : vector<2x16x8xbf16>, vector<2x16x8xbf16>, vector<2x16x16xf32> -> vector<2x16x16xf32>
    %cst_25 = arith.constant 0.353553385 : f32
    %61 = vector.broadcast %cst_25 : f32 to vector<2x16x16xf32>
    %62 = arith.mulf %60, %61 : vector<2x16x16xf32>
    %cst_26 = arith.constant dense<0xFF800000> : vector<2x16xf32>
    %63 = vector.multi_reduction <maximumf>, %62, %cst_26 [2] : vector<2x16x16xf32> to vector<2x16xf32>
    %64 = vector.shape_cast %63 : vector<2x16xf32> to vector<2x16x1xf32>
    %65 = vector.broadcast %64 : vector<2x16x1xf32> to vector<2x16x16xf32>
    %66 = arith.subf %62, %65 : vector<2x16x16xf32>
    %67 = math.exp %66 : vector<2x16x16xf32>
    %cst_27 = arith.constant dense<0.000000e+00> : vector<2x16xf32>
    %68 = vector.multi_reduction <add>, %67, %cst_27 [2] : vector<2x16x16xf32> to vector<2x16xf32>
    %69 = vector.shape_cast %68 : vector<2x16xf32> to vector<2x16x1xf32>
    %70 = tpu.reciprocal %69 {approx = true} : vector<2x16x1xf32> -> vector<2x16x1xf32>
    %71 = vector.broadcast %70 : vector<2x16x1xf32> to vector<2x16x16xf32>
    %72 = arith.mulf %67, %71 : vector<2x16x16xf32>
    %73 = arith.truncf %72 : vector<2x16x16xf32> to vector<2x16x16xbf16>
    %cst_28 = arith.constant dense<0.000000e+00> : vector<2x16x8xf32>
    %74 = tpu.matmul %73, %59, %cst_28 {dimension_numbers = #tpu.dot_dimension_numbers<[2], [1], [1], [2], [0, 0, 0, 1, 1, 2], [0], [0]>} : vector<2x16x16xbf16>, vector<2x16x8xbf16>, vector<2x16x8xf32> -> vector<2x16x8xf32>
    %75 = vector.shape_cast %74 : vector<2x16x8xf32> to vector<32x8xf32>
    %76 = arith.truncf %75 : vector<32x8xf32> to vector<32x8xbf16>
    %c0_29 = arith.constant 0 : index
    %c0_30 = arith.constant 0 : index
    %77 = vector.load %arg19[%c0_29, %c0_30] : memref<32x32xbf16, #tpu.memory_space<vmem>>, vector<32x8xbf16>
    tpu.vector_store %arg19[%c0_29, %c0_30], %76 {strides = array<i32>} : memref<32x32xbf16, #tpu.memory_space<vmem>>, vector<32x8xbf16>,
    %78 = vector.extract_strided_slice %38 {offsets = [0, 0, 8], sizes = [2, 16, 8], strides = [1, 1, 1]} : vector<2x16x32xbf16> to vector<2x16x8xbf16>
    %79 = vector.extract_strided_slice %47 {offsets = [0, 0, 8], sizes = [2, 16, 8], strides = [1, 1, 1]} : vector<2x16x32xbf16> to vector<2x16x8xbf16>
    %80 = vector.extract_strided_slice %56 {offsets = [0, 0, 8], sizes = [2, 16, 8], strides = [1, 1, 1]} : vector<2x16x32xbf16> to vector<2x16x8xbf16>
    %cst_31 = arith.constant dense<0.000000e+00> : vector<2x16x16xf32>
    %81 = tpu.matmul %78, %79, %cst_31 {dimension_numbers = #tpu.dot_dimension_numbers<[2], [2], [1], [1], [0, 0, 0, 1, 1, 1], [0], [0]>} : vector<2x16x8xbf16>, vector<2x16x8xbf16>, vector<2x16x16xf32> -> vector<2x16x16xf32>
    %cst_32 = arith.constant 0.353553385 : f32
    %82 = vector.broadcast %cst_32 : f32 to vector<2x16x16xf32>
    %83 = arith.mulf %81, %82 : vector<2x16x16xf32>
    %cst_33 = arith.constant dense<0xFF800000> : vector<2x16xf32>
    %84 = vector.multi_reduction <maximumf>, %83, %cst_33 [2] : vector<2x16x16xf32> to vector<2x16xf32>
    %85 = vector.shape_cast %84 : vector<2x16xf32> to vector<2x16x1xf32>
    %86 = vector.broadcast %85 : vector<2x16x1xf32> to vector<2x16x16xf32>
    %87 = arith.subf %83, %86 : vector<2x16x16xf32>
    %88 = math.exp %87 : vector<2x16x16xf32>
    %cst_34 = arith.constant dense<0.000000e+00> : vector<2x16xf32>
    %89 = vector.multi_reduction <add>, %88, %cst_34 [2] : vector<2x16x16xf32> to vector<2x16xf32>
    %90 = vector.shape_cast %89 : vector<2x16xf32> to vector<2x16x1xf32>
    %91 = tpu.reciprocal %90 {approx = true} : vector<2x16x1xf32> -> vector<2x16x1xf32>
    %92 = vector.broadcast %91 : vector<2x16x1xf32> to vector<2x16x16xf32>
    %93 = arith.mulf %88, %92 : vector<2x16x16xf32>
    %94 = arith.truncf %93 : vector<2x16x16xf32> to vector<2x16x16xbf16>
    %cst_35 = arith.constant dense<0.000000e+00> : vector<2x16x8xf32>
    %95 = tpu.matmul %94, %80, %cst_35 {dimension_numbers = #tpu.dot_dimension_numbers<[2], [1], [1], [2], [0, 0, 0, 1, 1, 2], [0], [0]>} : vector<2x16x16xbf16>, vector<2x16x8xbf16>, vector<2x16x8xf32> -> vector<2x16x8xf32>
    %96 = vector.shape_cast %95 : vector<2x16x8xf32> to vector<32x8xf32>
    %97 = arith.truncf %96 : vector<32x8xf32> to vector<32x8xbf16>
    %c0_36 = arith.constant 0 : index
    %c8 = arith.constant 8 : index
    %98 = vector.load %arg19[%c0_36, %c8] : memref<32x32xbf16, #tpu.memory_space<vmem>>, vector<32x8xbf16>
    tpu.vector_store %arg19[%c0_36, %c8], %97 {strides = array<i32>} : memref<32x32xbf16, #tpu.memory_space<vmem>>, vector<32x8xbf16>,
    %99 = vector.extract_strided_slice %38 {offsets = [0, 0, 16], sizes = [2, 16, 8], strides = [1, 1, 1]} : vector<2x16x32xbf16> to vector<2x16x8xbf16>
    %100 = vector.extract_strided_slice %47 {offsets = [0, 0, 16], sizes = [2, 16, 8], strides = [1, 1, 1]} : vector<2x16x32xbf16> to vector<2x16x8xbf16>
    %101 = vector.extract_strided_slice %56 {offsets = [0, 0, 16], sizes = [2, 16, 8], strides = [1, 1, 1]} : vector<2x16x32xbf16> to vector<2x16x8xbf16>
    %cst_37 = arith.constant dense<0.000000e+00> : vector<2x16x16xf32>
    %102 = tpu.matmul %99, %100, %cst_37 {dimension_numbers = #tpu.dot_dimension_numbers<[2], [2], [1], [1], [0, 0, 0, 1, 1, 1], [0], [0]>} : vector<2x16x8xbf16>, vector<2x16x8xbf16>, vector<2x16x16xf32> -> vector<2x16x16xf32>
    %cst_38 = arith.constant 0.353553385 : f32
    %103 = vector.broadcast %cst_38 : f32 to vector<2x16x16xf32>
    %104 = arith.mulf %102, %103 : vector<2x16x16xf32>
    %cst_39 = arith.constant dense<0xFF800000> : vector<2x16xf32>
    %105 = vector.multi_reduction <maximumf>, %104, %cst_39 [2] : vector<2x16x16xf32> to vector<2x16xf32>
    %106 = vector.shape_cast %105 : vector<2x16xf32> to vector<2x16x1xf32>
    %107 = vector.broadcast %106 : vector<2x16x1xf32> to vector<2x16x16xf32>
    %108 = arith.subf %104, %107 : vector<2x16x16xf32>
    %109 = math.exp %108 : vector<2x16x16xf32>
    %cst_40 = arith.constant dense<0.000000e+00> : vector<2x16xf32>
    %110 = vector.multi_reduction <add>, %109, %cst_40 [2] : vector<2x16x16xf32> to vector<2x16xf32>
    %111 = vector.shape_cast %110 : vector<2x16xf32> to vector<2x16x1xf32>
    %112 = tpu.reciprocal %111 {approx = true} : vector<2x16x1xf32> -> vector<2x16x1xf32>
    %113 = vector.broadcast %112 : vector<2x16x1xf32> to vector<2x16x16xf32>
    %114 = arith.mulf %109, %113 : vector<2x16x16xf32>
    %115 = arith.truncf %114 : vector<2x16x16xf32> to vector<2x16x16xbf16>
    %cst_41 = arith.constant dense<0.000000e+00> : vector<2x16x8xf32>
    %116 = tpu.matmul %115, %101, %cst_41 {dimension_numbers = #tpu.dot_dimension_numbers<[2], [1], [1], [2], [0, 0, 0, 1, 1, 2], [0], [0]>} : vector<2x16x16xbf16>, vector<2x16x8xbf16>, vector<2x16x8xf32> -> vector<2x16x8xf32>
    %117 = vector.shape_cast %116 : vector<2x16x8xf32> to vector<32x8xf32>
    %118 = arith.truncf %117 : vector<32x8xf32> to vector<32x8xbf16>
    %c0_42 = arith.constant 0 : index
    %c16 = arith.constant 16 : index
    %119 = vector.load %arg19[%c0_42, %c16] : memref<32x32xbf16, #tpu.memory_space<vmem>>, vector<32x8xbf16>
    tpu.vector_store %arg19[%c0_42, %c16], %118 {strides = array<i32>} : memref<32x32xbf16, #tpu.memory_space<vmem>>, vector<32x8xbf16>,
    %120 = vector.extract_strided_slice %38 {offsets = [0, 0, 24], sizes = [2, 16, 8], strides = [1, 1, 1]} : vector<2x16x32xbf16> to vector<2x16x8xbf16>
    %121 = vector.extract_strided_slice %47 {offsets = [0, 0, 24], sizes = [2, 16, 8], strides = [1, 1, 1]} : vector<2x16x32xbf16> to vector<2x16x8xbf16>
    %122 = vector.extract_strided_slice %56 {offsets = [0, 0, 24], sizes = [2, 16, 8], strides = [1, 1, 1]} : vector<2x16x32xbf16> to vector<2x16x8xbf16>
    %cst_43 = arith.constant dense<0.000000e+00> : vector<2x16x16xf32>
    %123 = tpu.matmul %120, %121, %cst_43 {dimension_numbers = #tpu.dot_dimension_numbers<[2], [2], [1], [1], [0, 0, 0, 1, 1, 1], [0], [0]>} : vector<2x16x8xbf16>, vector<2x16x8xbf16>, vector<2x16x16xf32> -> vector<2x16x16xf32>
    %cst_44 = arith.constant 0.353553385 : f32
    %124 = vector.broadcast %cst_44 : f32 to vector<2x16x16xf32>
    %125 = arith.mulf %123, %124 : vector<2x16x16xf32>
    %cst_45 = arith.constant dense<0xFF800000> : vector<2x16xf32>
    %126 = vector.multi_reduction <maximumf>, %125, %cst_45 [2] : vector<2x16x16xf32> to vector<2x16xf32>
    %127 = vector.shape_cast %126 : vector<2x16xf32> to vector<2x16x1xf32>
    %128 = vector.broadcast %127 : vector<2x16x1xf32> to vector<2x16x16xf32>
    %129 = arith.subf %125, %128 : vector<2x16x16xf32>
    %130 = math.exp %129 : vector<2x16x16xf32>
    %cst_46 = arith.constant dense<0.000000e+00> : vector<2x16xf32>
    %131 = vector.multi_reduction <add>, %130, %cst_46 [2] : vector<2x16x16xf32> to vector<2x16xf32>
    %132 = vector.shape_cast %131 : vector<2x16xf32> to vector<2x16x1xf32>
    %133 = tpu.reciprocal %132 {approx = true} : vector<2x16x1xf32> -> vector<2x16x1xf32>
    %134 = vector.broadcast %133 : vector<2x16x1xf32> to vector<2x16x16xf32>
    %135 = arith.mulf %130, %134 : vector<2x16x16xf32>
    %136 = arith.truncf %135 : vector<2x16x16xf32> to vector<2x16x16xbf16>
    %cst_47 = arith.constant dense<0.000000e+00> : vector<2x16x8xf32>
    %137 = tpu.matmul %136, %122, %cst_47 {dimension_numbers = #tpu.dot_dimension_numbers<[2], [1], [1], [2], [0, 0, 0, 1, 1, 2], [0], [0]>} : vector<2x16x16xbf16>, vector<2x16x8xbf16>, vector<2x16x8xf32> -> vector<2x16x8xf32>
    %138 = vector.shape_cast %137 : vector<2x16x8xf32> to vector<32x8xf32>
    %139 = arith.truncf %138 : vector<32x8xf32> to vector<32x8xbf16>
    %c0_48 = arith.constant 0 : index
    %c24 = arith.constant 24 : index
    %140 = vector.load %arg19[%c0_48, %c24] : memref<32x32xbf16, #tpu.memory_space<vmem>>, vector<32x8xbf16>
    tpu.vector_store %arg19[%c0_48, %c24], %139 {strides = array<i32>} : memref<32x32xbf16, #tpu.memory_space<vmem>>, vector<32x8xbf16>,
    %c0_49 = arith.constant 0 : index
    %c0_50 = arith.constant 0 : index
    %141 = vector.load %arg19[%c0_49, %c0_50] : memref<32x32xbf16, #tpu.memory_space<vmem>>, vector<32x32xbf16>
    %c0_51 = arith.constant 0 : index
    %c0_52 = arith.constant 0 : index
    %142 = vector.load %arg10[%c0_51, %c0_52] : memref<32x32xbf16, #tpu.memory_space<vmem>>, vector<32x32xbf16>
    %cst_53 = arith.constant dense<0.000000e+00> : vector<32x32xf32>
    %143 = tpu.matmul %141, %142, %cst_53 {dimension_numbers = #tpu.dot_dimension_numbers<[1], [0], [0], [1], [0, 0, 1, 1], [], []>} : vector<32x32xbf16>, vector<32x32xbf16>, vector<32x32xf32> -> vector<32x32xf32>
    %c0_54 = arith.constant 0 : index
    %c0_55 = arith.constant 0 : index
    %144 = vector.load %arg11[%c0_54, %c0_55] : memref<1x32xf32, #tpu.memory_space<vmem>>, vector<1x32xf32>
    %145 = vector.shape_cast %144 : vector<1x32xf32> to vector<32xf32>
    %146 = vector.shape_cast %145 : vector<32xf32> to vector<1x32xf32>
    %147 = vector.broadcast %146 : vector<1x32xf32> to vector<32x32xf32>
    %148 = arith.addf %143, %147 : vector<32x32xf32>
    %149 = arith.addf %0, %148 : vector<32x32xf32>
    %c0_56 = arith.constant 0 : index
    %c0_57 = arith.constant 0 : index
    %150 = vector.load %arg12[%c0_56, %c0_57] : memref<1x32xf32, #tpu.memory_space<vmem>>, vector<1x32xf32>
    %151 = vector.shape_cast %150 : vector<1x32xf32> to vector<32xf32>
    %c0_58 = arith.constant 0 : index
    %c0_59 = arith.constant 0 : index
    %152 = vector.load %arg13[%c0_58, %c0_59] : memref<1x32xf32, #tpu.memory_space<vmem>>, vector<1x32xf32>
    %153 = vector.shape_cast %152 : vector<1x32xf32> to vector<32xf32>
    %cst_60 = arith.constant dense<0.000000e+00> : vector<32xf32>
    %154 = vector.multi_reduction <add>, %149, %cst_60 [1] : vector<32x32xf32> to vector<32xf32>
    %155 = vector.shape_cast %154 : vector<32xf32> to vector<32x1xf32>
    %cst_61 = arith.constant 3.200000e+01 : f32
    %156 = vector.broadcast %cst_61 : f32 to vector<32x1xf32>
    %157 = arith.divf %155, %156 : vector<32x1xf32>
    %158 = arith.mulf %149, %149 : vector<32x32xf32>
    %cst_62 = arith.constant dense<0.000000e+00> : vector<32xf32>
    %159 = vector.multi_reduction <add>, %158, %cst_62 [1] : vector<32x32xf32> to vector<32xf32>
    %160 = vector.shape_cast %159 : vector<32xf32> to vector<32x1xf32>
    %cst_63 = arith.constant 3.200000e+01 : f32
    %161 = vector.broadcast %cst_63 : f32 to vector<32x1xf32>
    %162 = arith.divf %160, %161 : vector<32x1xf32>
    %163 = arith.mulf %157, %157 : vector<32x1xf32>
    %164 = arith.subf %162, %163 : vector<32x1xf32>
    %165 = vector.broadcast %157 : vector<32x1xf32> to vector<32x32xf32>
    %166 = arith.subf %149, %165 : vector<32x32xf32>
    %cst_64 = arith.constant 9.99999974E-6 : f32
    %167 = vector.broadcast %cst_64 : f32 to vector<32x1xf32>
    %168 = arith.addf %164, %167 : vector<32x1xf32>
    %169 = math.rsqrt %168 : vector<32x1xf32>
    %170 = vector.broadcast %169 : vector<32x1xf32> to vector<32x32xf32>
    %171 = arith.mulf %166, %170 : vector<32x32xf32>
    %172 = vector.shape_cast %151 : vector<32xf32> to vector<1x32xf32>
    %173 = vector.broadcast %172 : vector<1x32xf32> to vector<32x32xf32>
    %174 = arith.mulf %171, %173 : vector<32x32xf32>
    %175 = vector.shape_cast %153 : vector<32xf32> to vector<1x32xf32>
    %176 = vector.broadcast %175 : vector<1x32xf32> to vector<32x32xf32>
    %177 = arith.addf %174, %176 : vector<32x32xf32>
    %178 = arith.truncf %177 : vector<32x32xf32> to vector<32x32xbf16>
    %c0_65 = arith.constant 0 : index
    %c0_66 = arith.constant 0 : index
    %179 = vector.load %arg14[%c0_65, %c0_66] : memref<32x128xbf16, #tpu.memory_space<vmem>>, vector<32x128xbf16>
    %cst_67 = arith.constant dense<0.000000e+00> : vector<32x128xf32>
    %180 = tpu.matmul %178, %179, %cst_67 {dimension_numbers = #tpu.dot_dimension_numbers<[1], [0], [0], [1], [0, 0, 1, 1], [], []>} : vector<32x32xbf16>, vector<32x128xbf16>, vector<32x128xf32> -> vector<32x128xf32>
    %c0_68 = arith.constant 0 : index
    %c0_69 = arith.constant 0 : index
    %181 = vector.load %arg15[%c0_68, %c0_69] : memref<1x128xf32, #tpu.memory_space<vmem>>, vector<1x128xf32>
    %182 = vector.shape_cast %181 : vector<1x128xf32> to vector<128xf32>
    %183 = vector.shape_cast %182 : vector<128xf32> to vector<1x128xf32>
    %184 = vector.broadcast %183 : vector<1x128xf32> to vector<32x128xf32>
    %185 = arith.addf %180, %184 : vector<32x128xf32>
    %cst_70 = arith.constant 5.000000e-01 : f32
    %186 = vector.broadcast %cst_70 : f32 to vector<32x128xf32>
    %187 = arith.mulf %186, %185 : vector<32x128xf32>
    %cst_71 = arith.constant 0.707106769 : f32
    %188 = vector.broadcast %cst_71 : f32 to vector<32x128xf32>
    %189 = arith.mulf %185, %188 : vector<32x128xf32>
    %190 = math.erf %189 : vector<32x128xf32>
    %cst_72 = arith.constant 1.000000e+00 : f32
    %191 = vector.broadcast %cst_72 : f32 to vector<32x128xf32>
    %192 = arith.addf %191, %190 : vector<32x128xf32>
    %193 = arith.mulf %187, %192 : vector<32x128xf32>
    %194 = arith.truncf %193 : vector<32x128xf32> to vector<32x128xbf16>
    %c0_73 = arith.constant 0 : index
    %c0_74 = arith.constant 0 : index
    %195 = vector.load %arg16[%c0_73, %c0_74] : memref<128x32xbf16, #tpu.memory_space<vmem>>, vector<128x32xbf16>
    %cst_75 = arith.constant dense<0.000000e+00> : vector<32x32xf32>
    %196 = tpu.matmul %194, %195, %cst_75 {dimension_numbers = #tpu.dot_dimension_numbers<[1], [0], [0], [1], [0, 0, 1, 1], [], []>} : vector<32x128xbf16>, vector<128x32xbf16>, vector<32x32xf32> -> vector<32x32xf32>
    %c0_76 = arith.constant 0 : index
    %c0_77 = arith.constant 0 : index
    %197 = vector.load %arg17[%c0_76, %c0_77] : memref<1x32xf32, #tpu.memory_space<vmem>>, vector<1x32xf32>
    %198 = vector.shape_cast %197 : vector<1x32xf32> to vector<32xf32>
    %199 = vector.shape_cast %198 : vector<32xf32> to vector<1x32xf32>
    %200 = vector.broadcast %199 : vector<1x32xf32> to vector<32x32xf32>
    %201 = arith.addf %196, %200 : vector<32x32xf32>
    %202 = arith.addf %149, %201 : vector<32x32xf32>
    %c0_78 = arith.constant 0 : index
    %c0_79 = arith.constant 0 : index
    %203 = vector.load %arg18[%c0_78, %c0_79] : memref<32x32xf32, #tpu.memory_space<vmem>>, vector<32x32xf32>
    tpu.vector_store %arg18[%c0_78, %c0_79], %202 {strides = array<i32>} : memref<32x32xf32, #tpu.memory_space<vmem>>, vector<32x32xf32>,
    return
  }
  func.func @transform_0(%arg0: i32) -> (i32, i32) {
    %c0_i32 = arith.constant 0 : i32
    %c0_i32_0 = arith.constant 0 : i32
    return %arg0, %c0_i32 : i32, i32
  }
  func.func @transform_1(%arg0: i32) -> (i32, i32) {
    %c0_i32 = arith.constant 0 : i32
    %c0_i32_0 = arith.constant 0 : i32
    %c0_i32_1 = arith.constant 0 : i32
    return %c0_i32, %c0_i32_0 : i32, i32
  }
  func.func @transform_2(%arg0: i32) -> (i32, i32) {
    %c0_i32 = arith.constant 0 : i32
    %c0_i32_0 = arith.constant 0 : i32
    %c0_i32_1 = arith.constant 0 : i32
    return %c0_i32, %c0_i32_0 : i32, i32
  }
  func.func @transform_3(%arg0: i32) -> (i32, i32) {
    %c0_i32 = arith.constant 0 : i32
    %c0_i32_0 = arith.constant 0 : i32
    %c0_i32_1 = arith.constant 0 : i32
    return %c0_i32, %c0_i32_0 : i32, i32
  }
  func.func @transform_4(%arg0: i32) -> (i32, i32) {
    %c0_i32 = arith.constant 0 : i32
    %c0_i32_0 = arith.constant 0 : i32
    %c0_i32_1 = arith.constant 0 : i32
    return %c0_i32, %c0_i32_0 : i32, i32
  }
  func.func @transform_5(%arg0: i32) -> (i32, i32) {
    %c0_i32 = arith.constant 0 : i32
    %c0_i32_0 = arith.constant 0 : i32
    %c0_i32_1 = arith.constant 0 : i32
    return %c0_i32, %c0_i32_0 : i32, i32
  }
  func.func @transform_6(%arg0: i32) -> (i32, i32) {
    %c0_i32 = arith.constant 0 : i32
    %c0_i32_0 = arith.constant 0 : i32
    %c0_i32_1 = arith.constant 0 : i32
    return %c0_i32, %c0_i32_0 : i32, i32
  }
  func.func @transform_7(%arg0: i32) -> (i32, i32) {
    %c0_i32 = arith.constant 0 : i32
    %c0_i32_0 = arith.constant 0 : i32
    %c0_i32_1 = arith.constant 0 : i32
    return %c0_i32, %c0_i32_0 : i32, i32
  }
  func.func @transform_8(%arg0: i32) -> (i32, i32) {
    %c0_i32 = arith.constant 0 : i32
    %c0_i32_0 = arith.constant 0 : i32
    %c0_i32_1 = arith.constant 0 : i32
    return %c0_i32, %c0_i32_0 : i32, i32
  }
  func.func @transform_9(%arg0: i32) -> (i32, i32) {
    %c0_i32 = arith.constant 0 : i32
    %c0_i32_0 = arith.constant 0 : i32
    %c0_i32_1 = arith.constant 0 : i32
    return %c0_i32, %c0_i32_0 : i32, i32
  }
  func.func @transform_10(%arg0: i32) -> (i32, i32) {
    %c0_i32 = arith.constant 0 : i32
    %c0_i32_0 = arith.constant 0 : i32
    %c0_i32_1 = arith.constant 0 : i32
    return %c0_i32, %c0_i32_0 : i32, i32
  }
  func.func @transform_11(%arg0: i32) -> (i32, i32) {
    %c0_i32 = arith.constant 0 : i32
    %c0_i32_0 = arith.constant 0 : i32
    %c0_i32_1 = arith.constant 0 : i32
    return %c0_i32, %c0_i32_0 : i32, i32
  }
  func.func @transform_12(%arg0: i32) -> (i32, i32) {
    %c0_i32 = arith.constant 0 : i32
    %c0_i32_0 = arith.constant 0 : i32
    %c0_i32_1 = arith.constant 0 : i32
    return %c0_i32, %c0_i32_0 : i32, i32
  }
  func.func @transform_13(%arg0: i32) -> (i32, i32) {
    %c0_i32 = arith.constant 0 : i32
    %c0_i32_0 = arith.constant 0 : i32
    %c0_i32_1 = arith.constant 0 : i32
    return %c0_i32, %c0_i32_0 : i32, i32
  }
  func.func @transform_14(%arg0: i32) -> (i32, i32) {
    %c0_i32 = arith.constant 0 : i32
    %c0_i32_0 = arith.constant 0 : i32
    %c0_i32_1 = arith.constant 0 : i32
    return %c0_i32, %c0_i32_0 : i32, i32
  }
  func.func @transform_15(%arg0: i32) -> (i32, i32) {
    %c0_i32 = arith.constant 0 : i32
    %c0_i32_0 = arith.constant 0 : i32
    %c0_i32_1 = arith.constant 0 : i32
    return %c0_i32, %c0_i32_0 : i32, i32
  }
  func.func @transform_16(%arg0: i32) -> (i32, i32) {
    %c0_i32 = arith.constant 0 : i32
    %c0_i32_0 = arith.constant 0 : i32
    %c0_i32_1 = arith.constant 0 : i32
    return %c0_i32, %c0_i32_0 : i32, i32
  }
  func.func @transform_17(%arg0: i32) -> (i32, i32) {
    %c0_i32 = arith.constant 0 : i32
    %c0_i32_0 = arith.constant 0 : i32
    return %arg0, %c0_i32 : i32, i32
  }
}

</mosaic_0001>

<llo_original>
// kernel: tpu_custom_call.1
$region0: #{tpu_custom_call.1}
  #allocation0 [shape = 'u32[]', space=smem, size = 0x4, offset = 0x4, fixed_abs, tag = 'smem constant byte address 0x4 - core index']
  #allocation1 [shape = 'u32[144,128]{1,0:T(1,128)}', space=vmem, size = 0x12000, scoped, tag = 'internal scratch']
  #allocation2 [shape = 'bf16[32,32]{1,0:T(16,128)(2,1)}', space=vmem, size = 0x2000, scoped, tag = 'scratch operand']
  %s0 = inlined_call_operand.vmem [shape: f32[32,32], index: 0, kind: input, shape index: {}]
  %s1 = inlined_call_operand.vmem [shape: f32[1,32], index: 1, kind: input, shape index: {}]
  %s2 = inlined_call_operand.hbm [shape: f32[1,32], index: 2, kind: input, shape index: {}]
  %s3 = inlined_call_operand.vmem [shape: bf16[32,32], index: 3, kind: input, shape index: {}]
  %s4 = inlined_call_operand.hbm [shape: f32[1,32], index: 4, kind: input, shape index: {}]
  %s5 = inlined_call_operand.vmem [shape: bf16[32,32], index: 5, kind: input, shape index: {}]
  %s6 = inlined_call_operand.hbm [shape: f32[1,32], index: 6, kind: input, shape index: {}]
  %s7 = inlined_call_operand.vmem [shape: bf16[32,32], index: 7, kind: input, shape index: {}]
  %s8 = inlined_call_operand.hbm [shape: f32[1,32], index: 8, kind: input, shape index: {}]
  %s9 = inlined_call_operand.vmem [shape: bf16[32,32], index: 9, kind: input, shape index: {}]
  %s10 = inlined_call_operand.hbm [shape: f32[1,32], index: 10, kind: input, shape index: {}]
  %s11 = inlined_call_operand.hbm [shape: f32[1,32], index: 11, kind: input, shape index: {}]
  %s12 = inlined_call_operand.hbm [shape: f32[1,32], index: 12, kind: input, shape index: {}]
  %s13 = inlined_call_operand.vmem [shape: bf16[32,128], index: 13, kind: input, shape index: {}]
  %s14 = inlined_call_operand.vmem [shape: f32[1,128], index: 14, kind: input, shape index: {}]
  %s15 = inlined_call_operand.vmem [shape: bf16[128,32], index: 15, kind: input, shape index: {}]
  %s16 = inlined_call_operand.vmem [shape: f32[1,32], index: 16, kind: input, shape index: {}]
  %s17 = inlined_call_operand.hbm [shape: f32[32,32], index: 17, kind: output, shape index: {}]
  %s18 = sld [smem:[#allocation0]]
  $region106: #{tpu_custom_call.1} parent=0
    _
  %s20 = ssub.s32 1, %s18
  %s21 = scalar_select 0, %s20, %s18
  $region1: #{tpu_custom_call.1} parent=0
    #allocation3 [shape = 'u8[512]{0}', space=vmem, size = 0x400, scoped, tag = 'input window, operand 2, single buffered']
    #allocation4 [shape = 's32[1]{0}', space=sflag, size = 0x4, scoped, tag = 'scoped memory for tpu_custom_call.1']
    #allocation5 [shape = 's32[1]{0}', space=sflag, size = 0x4, scoped, tag = 'scoped memory for tpu_custom_call.1']
    #allocation6 [shape = 'u8[512]{0}', space=vmem, size = 0x400, scoped, tag = 'input window, operand 4, single buffered']
    #allocation7 [shape = 's32[1]{0}', space=sflag, size = 0x4, scoped, tag = 'scoped memory for tpu_custom_call.1']
    #allocation8 [shape = 'u8[512]{0}', space=vmem, size = 0x400, scoped, tag = 'input window, operand 6, single buffered']
    #allocation9 [shape = 'u8[512]{0}', space=vmem, size = 0x400, scoped, tag = 'input window, operand 8, single buffered']
    #allocation10 [shape = 's32[1]{0}', space=sflag, size = 0x4, scoped, tag = 'scoped memory for tpu_custom_call.1']
    #allocation11 [shape = 'u8[512]{0}', space=vmem, size = 0x400, scoped, tag = 'input window, operand 10, single buffered']
    #allocation12 [shape = 'u8[512]{0}', space=vmem, size = 0x400, scoped, tag = 'input window, operand 11, single buffered']
    #allocation13 [shape = 's32[1]{0}', space=sflag, size = 0x4, scoped, tag = 'scoped memory for tpu_custom_call.1']
    #allocation14 [shape = 'u8[512]{0}', space=vmem, size = 0x400, scoped, tag = 'input window, operand 12, single buffered']
    #allocation15 [shape = 'u8[16384]{0}', space=vmem, size = 0x4000, scoped, tag = 'output window, operand 0, single buffered']
    %22 = vsyncpa [#allocation4], 0
    %23 = vsyncpa [#allocation7], 0
    %24 = vsyncpa [#allocation10], 0
    %25 = vsyncpa [#allocation13], 0
    %26 = vsyncpa [#allocation5], 0
    // Predicated region
    $region2: #{tpu_custom_call.1} parent=1 // pred_check
      _
    $region3: #{tpu_custom_call.1} parent=1 // pred_check_branch
      %28 = sbr.rel (0) target = $region5
    $region4: #{tpu_custom_call.1} parent=1 // pred_region
      _
    $region5: #{tpu_custom_call.1} parent=1 // pred_fallthru
      _
    // Predicated region
    $region6: #{tpu_custom_call.1} parent=1 // pred_check
      _
    $region7: #{tpu_custom_call.1} parent=1 // pred_check_branch
      %30 = sbr.rel (0) target = $region9
    $region8: #{tpu_custom_call.1} parent=1 // pred_region
      _
    $region9: #{tpu_custom_call.1} parent=1 // pred_fallthru
      _
    // Predicated region
    $region10: #{tpu_custom_call.1} parent=1 // pred_check
      _
    $region11: #{tpu_custom_call.1} parent=1 // pred_check_branch
      %32 = sbr.rel (0) target = $region13
    $region12: #{tpu_custom_call.1} parent=1 // pred_region
      %s34 = ssub.s32 16, 16
      %35 = vsyncadd [#allocation4], %s34
      %s37 = sshll.u32 [#allocation3], 4
      %s38 = int_to_ptr.vmem [resolvable:$true] %s37
      %40 = dma.hbm_to_vmem [thread:$0]  %s2, 16, %s38, [#allocation4]
    $region13: #{tpu_custom_call.1} parent=1 // pred_fallthru
      _
    // Predicated region
    $region14: #{tpu_custom_call.1} parent=1 // pred_check
      _
    $region15: #{tpu_custom_call.1} parent=1 // pred_check_branch
      %42 = sbr.rel (0) target = $region17
    $region16: #{tpu_custom_call.1} parent=1 // pred_region
      _
    $region17: #{tpu_custom_call.1} parent=1 // pred_fallthru
      _
    // Predicated region
    $region18: #{tpu_custom_call.1} parent=1 // pred_check
      _
    $region19: #{tpu_custom_call.1} parent=1 // pred_check_branch
      %44 = sbr.rel (0) target = $region21
    $region20: #{tpu_custom_call.1} parent=1 // pred_region
      %s46 = ssub.s32 16, 16
      %47 = vsyncadd [#allocation7], %s46
      %s49 = sshll.u32 [#allocation6], 4
      %s50 = int_to_ptr.vmem [resolvable:$true] %s49
      %52 = dma.hbm_to_vmem [thread:$0]  %s4, 16, %s50, [#allocation7]
    $region21: #{tpu_custom_call.1} parent=1 // pred_fallthru
      _
    // Predicated region
    $region22: #{tpu_custom_call.1} parent=1 // pred_check
      _
    $region23: #{tpu_custom_call.1} parent=1 // pred_check_branch
      %54 = sbr.rel (0) target = $region25
    $region24: #{tpu_custom_call.1} parent=1 // pred_region
      _
    $region25: #{tpu_custom_call.1} parent=1 // pred_fallthru
      _
    // Predicated region
    $region26: #{tpu_custom_call.1} parent=1 // pred_check
      _
    $region27: #{tpu_custom_call.1} parent=1 // pred_check_branch
      %56 = sbr.rel (0) target = $region29
    $region28: #{tpu_custom_call.1} parent=1 // pred_region
      %s58 = ssub.s32 16, 16
      %59 = vsyncadd [#allocation7], %s58
      %s61 = sshll.u32 [#allocation8], 4
      %s62 = int_to_ptr.vmem [resolvable:$true] %s61
      %64 = dma.hbm_to_vmem [thread:$0]  %s6, 16, %s62, [#allocation7]
    $region29: #{tpu_custom_call.1} parent=1 // pred_fallthru
      _
    // Predicated region
    $region30: #{tpu_custom_call.1} parent=1 // pred_check
      _
    $region31: #{tpu_custom_call.1} parent=1 // pred_check_branch
      %66 = sbr.rel (0) target = $region33
    $region32: #{tpu_custom_call.1} parent=1 // pred_region
      _
    $region33: #{tpu_custom_call.1} parent=1 // pred_fallthru
      _
    // Predicated region
    $region34: #{tpu_custom_call.1} parent=1 // pred_check
      _
    $region35: #{tpu_custom_call.1} parent=1 // pred_check_branch
      %68 = sbr.rel (0) target = $region37
    $region36: #{tpu_custom_call.1} parent=1 // pred_region
      %s70 = ssub.s32 16, 16
      %71 = vsyncadd [#allocation10], %s70
      %s73 = sshll.u32 [#allocation9], 4
      %s74 = int_to_ptr.vmem [resolvable:$true] %s73
      %76 = dma.hbm_to_vmem [thread:$0]  %s8, 16, %s74, [#allocation10]
    $region37: #{tpu_custom_call.1} parent=1 // pred_fallthru
      _
    // Predicated region
    $region38: #{tpu_custom_call.1} parent=1 // pred_check
      _
    $region39: #{tpu_custom_call.1} parent=1 // pred_check_branch
      %78 = sbr.rel (0) target = $region41
    $region40: #{tpu_custom_call.1} parent=1 // pred_region
      _
    $region41: #{tpu_custom_call.1} parent=1 // pred_fallthru
      _
    // Predicated region
    $region42: #{tpu_custom_call.1} parent=1 // pred_check
      _
    $region43: #{tpu_custom_call.1} parent=1 // pred_check_branch
      %80 = sbr.rel (0) target = $region45
    $region44: #{tpu_custom_call.1} parent=1 // pred_region
      %s82 = ssub.s32 16, 16
      %83 = vsyncadd [#allocation10], %s82
      %s85 = sshll.u32 [#allocation11], 4
      %s86 = int_to_ptr.vmem [resolvable:$true] %s85
      %88 = dma.hbm_to_vmem [thread:$0]  %s10, 16, %s86, [#allocation10]
    $region45: #{tpu_custom_call.1} parent=1 // pred_fallthru
      _
    // Predicated region
    $region46: #{tpu_custom_call.1} parent=1 // pred_check
      _
    $region47: #{tpu_custom_call.1} parent=1 // pred_check_branch
      %90 = sbr.rel (0) target = $region49
    $region48: #{tpu_custom_call.1} parent=1 // pred_region
      %s92 = ssub.s32 16, 16
      %93 = vsyncadd [#allocation13], %s92
      %s95 = sshll.u32 [#allocation12], 4
      %s96 = int_to_ptr.vmem [resolvable:$true] %s95
      %98 = dma.hbm_to_vmem [thread:$0]  %s11, 16, %s96, [#allocation13]
    $region49: #{tpu_custom_call.1} parent=1 // pred_fallthru
      _
    // Predicated region
    $region50: #{tpu_custom_call.1} parent=1 // pred_check
      _
    $region51: #{tpu_custom_call.1} parent=1 // pred_check_branch
      %100 = sbr.rel (0) target = $region53
    $region52: #{tpu_custom_call.1} parent=1 // pred_region
      %s102 = ssub.s32 16, 16
      %103 = vsyncadd [#allocation13], %s102
      %s105 = sshll.u32 [#allocation14], 4
      %s106 = int_to_ptr.vmem [resolvable:$true] %s105
      %108 = dma.hbm_to_vmem [thread:$0]  %s12, 16, %s106, [#allocation13]
    $region53: #{tpu_custom_call.1} parent=1 // pred_fallthru
      _
    // Predicated region
    $region54: #{tpu_custom_call.1} parent=1 // pred_check
      _
    $region55: #{tpu_custom_call.1} parent=1 // pred_check_branch
      %110 = sbr.rel (0) target = $region57
    $region56: #{tpu_custom_call.1} parent=1 // pred_region
      _
    $region57: #{tpu_custom_call.1} parent=1 // pred_fallthru
      _
    // Predicated region
    $region58: #{tpu_custom_call.1} parent=1 // pred_check
      _
    $region59: #{tpu_custom_call.1} parent=1 // pred_check_branch
      %112 = sbr.rel (0) target = $region61
    $region60: #{tpu_custom_call.1} parent=1 // pred_region
      _
    $region61: #{tpu_custom_call.1} parent=1 // pred_fallthru
      _
    // Predicated region
    $region62: #{tpu_custom_call.1} parent=1 // pred_check
      _
    $region63: #{tpu_custom_call.1} parent=1 // pred_check_branch
      %114 = sbr.rel (0) target = $region65
    $region64: #{tpu_custom_call.1} parent=1 // pred_region
      _
    $region65: #{tpu_custom_call.1} parent=1 // pred_fallthru
      _
    // Predicated region
    $region66: #{tpu_custom_call.1} parent=1 // pred_check
      _
    $region67: #{tpu_custom_call.1} parent=1 // pred_check_branch
      %116 = sbr.rel (0) target = $region69
    $region68: #{tpu_custom_call.1} parent=1 // pred_region
      _
    $region69: #{tpu_custom_call.1} parent=1 // pred_fallthru
      _
    // Predicated region
    $region70: #{tpu_custom_call.1} parent=1 // pred_check
      _
    $region71: #{tpu_custom_call.1} parent=1 // pred_check_branch
      %118 = sbr.rel (0) target = $region73
    $region72: #{tpu_custom_call.1} parent=1 // pred_region
      %119 = dma.done [#allocation4], 16
    $region73: #{tpu_custom_call.1} parent=1 // pred_fallthru
      _
    // Predicated region
    $region74: #{tpu_custom_call.1} parent=1 // pred_check
      _
    $region75: #{tpu_custom_call.1} parent=1 // pred_check_branch
      %121 = sbr.rel (0) target = $region77
    $region76: #{tpu_custom_call.1} parent=1 // pred_region
      %122 = dma.done [#allocation7], 16
    $region77: #{tpu_custom_call.1} parent=1 // pred_fallthru
      _
    // Predicated region
    $region78: #{tpu_custom_call.1} parent=1 // pred_check
      _
    $region79: #{tpu_custom_call.1} parent=1 // pred_check_branch
      %124 = sbr.rel (0) target = $region81
    $region80: #{tpu_custom_call.1} parent=1 // pred_region
      %125 = dma.done [#allocation7], 16
    $region81: #{tpu_custom_call.1} parent=1 // pred_fallthru
      _
    // Predicated region
    $region82: #{tpu_custom_call.1} parent=1 // pred_check
      _
    $region83: #{tpu_custom_call.1} parent=1 // pred_check_branch
      %127 = sbr.rel (0) target = $region85
    $region84: #{tpu_custom_call.1} parent=1 // pred_region
      %128 = dma.done [#allocation10], 16
    $region85: #{tpu_custom_call.1} parent=1 // pred_fallthru
      _
    // Predicated region
    $region86: #{tpu_custom_call.1} parent=1 // pred_check
      _
    $region87: #{tpu_custom_call.1} parent=1 // pred_check_branch
      %130 = sbr.rel (0) target = $region89
    $region88: #{tpu_custom_call.1} parent=1 // pred_region
      %131 = dma.done [#allocation10], 16
    $region89: #{tpu_custom_call.1} parent=1 // pred_fallthru
      _
    // Predicated region
    $region90: #{tpu_custom_call.1} parent=1 // pred_check
      _
    $region91: #{tpu_custom_call.1} parent=1 // pred_check_branch
      %133 = sbr.rel (0) target = $region93
    $region92: #{tpu_custom_call.1} parent=1 // pred_region
      %134 = dma.done [#allocation13], 16
    $region93: #{tpu_custom_call.1} parent=1 // pred_fallthru
      _
    // Predicated region
    $region94: #{tpu_custom_call.1} parent=1 // pred_check
      _
    $region95: #{tpu_custom_call.1} parent=1 // pred_check_branch
      %136 = sbr.rel (0) target = $region97
    $region96: #{tpu_custom_call.1} parent=1 // pred_region
      %137 = dma.done [#allocation13], 16
    $region97: #{tpu_custom_call.1} parent=1 // pred_fallthru
      _
    %v139 = vld [vmem:[%s0] sm:$0xff]
    %v140 = vld [vmem:[%s0 + $0x8] sm:$0xff]
    %v141 = vld [vmem:[%s0 + $0x10] sm:$0xff]
    %v142 = vld [vmem:[%s0 + $0x18] sm:$0xff]
    %v143 = vld [vmem:[%s1] sm:$0x1]
    %v144 = vld [vmem:[#allocation3] sm:$0x1]
    %vm145 = vcmask 261120
    %v146 = vsel %vm145, %v139, 0.0
    %147 = vadd.xlane.f32.xlu0 %v146
    %v148 = vpop.xlane.xlu0 %147
    %v149 = vsel %vm145, %v140, 0.0
    %150 = vadd.xlane.f32.xlu0 %v149
    %v151 = vpop.xlane.xlu0 %150
    %v152 = vsel %vm145, %v141, 0.0
    %153 = vadd.xlane.f32.xlu0 %v152
    %v154 = vpop.xlane.xlu0 %153
    %v155 = vsel %vm145, %v142, 0.0
    %156 = vadd.xlane.f32.xlu0 %v155
    %v157 = vpop.xlane.xlu0 %156
    %v158 = vrcp.pop 32.0
    %v159 = vmul.f32 %v148, %v158
    %v160 = vmul.f32 %v151, %v158
    %v161 = vmul.f32 %v154, %v158
    %v162 = vmul.f32 %v157, %v158
    %v163 = vmul.f32 %v139, %v139
    %v164 = vmul.f32 %v140, %v140
    %v165 = vmul.f32 %v141, %v141
    %v166 = vmul.f32 %v142, %v142
    %v167 = vsel %vm145, %v163, 0.0
    %168 = vadd.xlane.f32.xlu0 %v167
    %v169 = vpop.xlane.xlu0 %168
    %v170 = vsel %vm145, %v164, 0.0
    %171 = vadd.xlane.f32.xlu0 %v170
    %v172 = vpop.xlane.xlu0 %171
    %v173 = vsel %vm145, %v165, 0.0
    %174 = vadd.xlane.f32.xlu0 %v173
    %v175 = vpop.xlane.xlu0 %174
    %v176 = vsel %vm145, %v166, 0.0
    %177 = vadd.xlane.f32.xlu0 %v176
    %v178 = vpop.xlane.xlu0 %177
    %v179 = vmul.f32 %v169, %v158
    %v180 = vmul.f32 %v172, %v158
    %v181 = vmul.f32 %v175, %v158
    %v182 = vmul.f32 %v178, %v158
    %v183 = vmul.f32 %v159, %v159
    %v184 = vmul.f32 %v160, %v160
    %v185 = vmul.f32 %v161, %v161
    %v186 = vmul.f32 %v162, %v162
    %v187 = vsub.f32 %v179, %v183
    %v188 = vsub.f32 %v180, %v184
    %v189 = vsub.f32 %v181, %v185
    %v190 = vsub.f32 %v182, %v186
    %v191 = vsub.f32 %v139, %v159
    %v192 = vsub.f32 %v140, %v160
    %v193 = vsub.f32 %v141, %v161
    %v194 = vsub.f32 %v142, %v162
    %v195 = vadd.f32 %v187, 1e-05
    %v196 = vadd.f32 %v188, 1e-05
    %v197 = vadd.f32 %v189, 1e-05
    %v198 = vadd.f32 %v190, 1e-05
    %v199 = vrsqrt.pop %v195
    %v200 = vrsqrt.pop %v196
    %v201 = vrsqrt.pop %v197
    %v202 = vrsqrt.pop %v198
    %v203 = vmul.f32 %v191, %v199
    %v204 = vmul.f32 %v192, %v200
    %v205 = vmul.f32 %v193, %v201
    %v206 = vmul.f32 %v194, %v202
    %v208 = vlaneseq
    %v209 = vshrl.u32 %v208, 7
    %v210 = vsub.s32 0, %v209
    %v211 = vrot.slane %v143, %v210
    %v213 = vmul.f32 %v203, %v211
    %v214 = vmul.f32 %v204, %v211
    %v215 = vmul.f32 %v205, %v211
    %v216 = vmul.f32 %v206, %v211
    %v218 = vlaneseq
    %v219 = vshrl.u32 %v218, 7
    %v220 = vsub.s32 0, %v219
    %v221 = vrot.slane %v144, %v220
    %v223 = vadd.f32 %v213, %v221
    %v224 = vadd.f32 %v214, %v221
    %v225 = vadd.f32 %v215, %v221
    %v226 = vadd.f32 %v216, %v221
    %v227 = vpack.c.bf16 %v224, %v223
    %v228 = vpack.c.bf16 %v226, %v225
    %v229 = vld [vmem:[%s3] sm:$0xf]
    %v230 = vld [vmem:[%s3 + $0x4] sm:$0xf]
    %v231 = vld [vmem:[%s3 + $0x8] sm:$0xf]
    %v232 = vld [vmem:[%s3 + $0xc] sm:$0xf]
    %v233 = vld [vmem:[#allocation6] sm:$0x1]
    %v235 = vlaneseq
    %v236 = vshrl.u32 %v235, 7
    %v237 = vsub.s32 0, %v236
    %v238 = vrot.slane %v233, %v237
    %v244 = vunpack.c.l.b16 %v229
    %v245 = vunpack.c.l.b16 %v230
    %v246 = vunpack.c.l.b16 %v231
    %v247 = vunpack.c.l.b16 %v232
    %v248 = vpack.c.b16 %v245, %v244
    %v249 = vpack.c.b16 %v247, %v246
    %v253 = vsel %vm145, %v227, 0
    %v256 = vsel %vm145, %v228, 0
    %258 = vmatprep.subr.bf16.mxu0 0
    %259 = vmatpush1.bf16.msra.mxu0 %v248
    %260 = vmatprep.subr.bf16.mxu0 0
    %261 = vmatpush1.bf16.msra.mxu0 %v249
    %262 = vmatprep.subr.bf16.mxu0 0
    %263 = vmatpush1.bf16.msra.mxu0 0
    %264 = vmatprep.subr.bf16.mxu0 0
    %265 = vmatpush1.bf16.msra.mxu0 0
    %266 = vmatprep.subr.bf16.mxu0 0
    %267 = vmatpush1.bf16.msra.mxu0 0
    %268 = vmatprep.subr.bf16.mxu0 0
    %269 = vmatpush1.bf16.msra.mxu0 0
    %270 = vmatprep.subr.bf16.mxu0 0
    %271 = vmatpush1.bf16.msra.mxu0 0
    %272 = vmatprep.subr.bf16.mxu0 0
    %273 = vmatpush1.bf16.msra.mxu0 0
    %274 = vmatprep.subr.bf16.mxu0 0
    %275 = vmatpush1.bf16.msra.mxu0 0
    %276 = vmatprep.subr.bf16.mxu0 0
    %277 = vmatpush1.bf16.msra.mxu0 0
    %278 = vmatprep.subr.bf16.mxu0 0
    %279 = vmatpush1.bf16.msra.mxu0 0
    %280 = vmatprep.subr.bf16.mxu0 0
    %281 = vmatpush1.bf16.msra.mxu0 0
    %282 = vmatprep.subr.bf16.mxu0 0
    %283 = vmatpush1.bf16.msra.mxu0 0
    %284 = vmatprep.subr.bf16.mxu0 0
    %285 = vmatpush1.bf16.msra.mxu0 0
    %286 = vmatprep.subr.bf16.mxu0 0
    %287 = vmatpush1.bf16.msra.mxu0 0
    %288 = vmatprep.subr.bf16.mxu0 0
    %289 = vmatpush1.bf16.msra.mxu0 0
    %290 = vmatprep.mubr.bf16.mxu0 0
    %291 = vmatmul.mubr.bf16.gmra.mrb[0].mxu0 %v253
    %v292 = vpop.f32.mrb[0].mxu0
    %v293 = vadd.f32 %v238, %v292
    %v294 = vpop.f32.mrb[0].mxu0
    %v295 = vpop.f32.mrb[0].mxu0
    %v296 = vadd.f32 %v238, %v295
    %v297 = vpop.f32.mrb[0].mxu0
    %298 = vmatprep.mubr.bf16.mxu0 0
    %299 = vmatmul.mubr.bf16.gmra.mrb[0].mxu0 %v256
    %v300 = vpop.f32.mrb[0].mxu0
    %v301 = vadd.f32 %v238, %v300
    %v302 = vpop.f32.mrb[0].mxu0
    %v303 = vpop.f32.mrb[0].mxu0
    %v304 = vadd.f32 %v238, %v303
    %v305 = vpop.f32.mrb[0].mxu0
    %306 = vdwg.mxu0
    %v307 = vpack.c.bf16 %v296, %v293
    %v308 = vpack.c.bf16 %v304, %v301
    %v309 = vld [vmem:[%s5] sm:$0xf]
    %v310 = vld [vmem:[%s5 + $0x4] sm:$0xf]
    %v311 = vld [vmem:[%s5 + $0x8] sm:$0xf]
    %v312 = vld [vmem:[%s5 + $0xc] sm:$0xf]
    %v313 = vld [vmem:[#allocation8] sm:$0x1]
    %v315 = vlaneseq
    %v316 = vshrl.u32 %v315, 7
    %v317 = vsub.s32 0, %v316
    %v318 = vrot.slane %v313, %v317
    %v324 = vunpack.c.l.b16 %v309
    %v325 = vunpack.c.l.b16 %v310
    %v326 = vunpack.c.l.b16 %v311
    %v327 = vunpack.c.l.b16 %v312
    %v328 = vpack.c.b16 %v325, %v324
    %v329 = vpack.c.b16 %v327, %v326
    %332 = vmatprep.subr.bf16.mxu0 0
    %333 = vmatpush1.bf16.msra.mxu0 %v328
    %334 = vmatprep.subr.bf16.mxu0 0
    %335 = vmatpush1.bf16.msra.mxu0 %v329
    %336 = vmatprep.subr.bf16.mxu0 0
    %337 = vmatpush1.bf16.msra.mxu0 0
    %338 = vmatprep.subr.bf16.mxu0 0
    %339 = vmatpush1.bf16.msra.mxu0 0
    %340 = vmatprep.subr.bf16.mxu0 0
    %341 = vmatpush1.bf16.msra.mxu0 0
    %342 = vmatprep.subr.bf16.mxu0 0
    %343 = vmatpush1.bf16.msra.mxu0 0
    %344 = vmatprep.subr.bf16.mxu0 0
    %345 = vmatpush1.bf16.msra.mxu0 0
    %346 = vmatprep.subr.bf16.mxu0 0
    %347 = vmatpush1.bf16.msra.mxu0 0
    %348 = vmatprep.subr.bf16.mxu0 0
    %349 = vmatpush1.bf16.msra.mxu0 0
    %350 = vmatprep.subr.bf16.mxu0 0
    %351 = vmatpush1.bf16.msra.mxu0 0
    %352 = vmatprep.subr.bf16.mxu0 0
    %353 = vmatpush1.bf16.msra.mxu0 0
    %354 = vmatprep.subr.bf16.mxu0 0
    %355 = vmatpush1.bf16.msra.mxu0 0
    %356 = vmatprep.subr.bf16.mxu0 0
    %357 = vmatpush1.bf16.msra.mxu0 0
    %358 = vmatprep.subr.bf16.mxu0 0
    %359 = vmatpush1.bf16.msra.mxu0 0
    %360 = vmatprep.subr.bf16.mxu0 0
    %361 = vmatpush1.bf16.msra.mxu0 0
    %362 = vmatprep.subr.bf16.mxu0 0
    %363 = vmatpush1.bf16.msra.mxu0 0
    %364 = vmatprep.mubr.bf16.mxu0 0
    %365 = vmatmul.mubr.bf16.gmra.mrb[0].mxu0 %v253
    %v366 = vpop.f32.mrb[0].mxu0
    %v367 = vadd.f32 %v318, %v366
    %v368 = vpop.f32.mrb[0].mxu0
    %v369 = vpop.f32.mrb[0].mxu0
    %v370 = vadd.f32 %v318, %v369
    %v371 = vpop.f32.mrb[0].mxu0
    %372 = vmatprep.mubr.bf16.mxu0 0
    %373 = vmatmul.mubr.bf16.gmra.mrb[0].mxu0 %v256
    %v374 = vpop.f32.mrb[0].mxu0
    %v375 = vadd.f32 %v318, %v374
    %v376 = vpop.f32.mrb[0].mxu0
    %v377 = vpop.f32.mrb[0].mxu0
    %v378 = vadd.f32 %v318, %v377
    %v379 = vpop.f32.mrb[0].mxu0
    %380 = vdwg.mxu0
    %v381 = vpack.c.bf16 %v370, %v367
    %v382 = vpack.c.bf16 %v378, %v375
    %v383 = vld [vmem:[%s7] sm:$0xf]
    %v384 = vld [vmem:[%s7 + $0x4] sm:$0xf]
    %v385 = vld [vmem:[%s7 + $0x8] sm:$0xf]
    %v386 = vld [vmem:[%s7 + $0xc] sm:$0xf]
    %v387 = vld [vmem:[#allocation9] sm:$0x1]
    %v389 = vlaneseq
    %v390 = vshrl.u32 %v389, 7
    %v391 = vsub.s32 0, %v390
    %v392 = vrot.slane %v387, %v391
    %v398 = vunpack.c.l.b16 %v383
    %v399 = vunpack.c.l.b16 %v384
    %v400 = vunpack.c.l.b16 %v385
    %v401 = vunpack.c.l.b16 %v386
    %v402 = vpack.c.b16 %v399, %v398
    %v403 = vpack.c.b16 %v401, %v400
    %406 = vmatprep.subr.bf16.mxu0 0
    %407 = vmatpush1.bf16.msra.mxu0 %v402
    %408 = vmatprep.subr.bf16.mxu0 0
    %409 = vmatpush1.bf16.msra.mxu0 %v403
    %410 = vmatprep.subr.bf16.mxu0 0
    %411 = vmatpush1.bf16.msra.mxu0 0
    %412 = vmatprep.subr.bf16.mxu0 0
    %413 = vmatpush1.bf16.msra.mxu0 0
    %414 = vmatprep.subr.bf16.mxu0 0
    %415 = vmatpush1.bf16.msra.mxu0 0
    %416 = vmatprep.subr.bf16.mxu0 0
    %417 = vmatpush1.bf16.msra.mxu0 0
    %418 = vmatprep.subr.bf16.mxu0 0
    %419 = vmatpush1.bf16.msra.mxu0 0
    %420 = vmatprep.subr.bf16.mxu0 0
    %421 = vmatpush1.bf16.msra.mxu0 0
    %422 = vmatprep.subr.bf16.mxu0 0
    %423 = vmatpush1.bf16.msra.mxu0 0
    %424 = vmatprep.subr.bf16.mxu0 0
    %425 = vmatpush1.bf16.msra.mxu0 0
    %426 = vmatprep.subr.bf16.mxu0 0
    %427 = vmatpush1.bf16.msra.mxu0 0
    %428 = vmatprep.subr.bf16.mxu0 0
    %429 = vmatpush1.bf16.msra.mxu0 0
    %430 = vmatprep.subr.bf16.mxu0 0
    %431 = vmatpush1.bf16.msra.mxu0 0
    %432 = vmatprep.subr.bf16.mxu0 0
    %433 = vmatpush1.bf16.msra.mxu0 0
    %434 = vmatprep.subr.bf16.mxu0 0
    %435 = vmatpush1.bf16.msra.mxu0 0
    %436 = vmatprep.subr.bf16.mxu0 0
    %437 = vmatpush1.bf16.msra.mxu0 0
    %438 = vmatprep.mubr.bf16.mxu0 0
    %439 = vmatmul.mubr.bf16.gmra.mrb[0].mxu0 %v253
    %v440 = vpop.f32.mrb[0].mxu0
    %v441 = vadd.f32 %v392, %v440
    %v442 = vpop.f32.mrb[0].mxu0
    %v443 = vpop.f32.mrb[0].mxu0
    %v444 = vadd.f32 %v392, %v443
    %v445 = vpop.f32.mrb[0].mxu0
    %446 = vmatprep.mubr.bf16.mxu0 0
    %447 = vmatmul.mubr.bf16.gmra.mrb[0].mxu0 %v256
    %v448 = vpop.f32.mrb[0].mxu0
    %v449 = vadd.f32 %v392, %v448
    %v450 = vpop.f32.mrb[0].mxu0
    %v451 = vpop.f32.mrb[0].mxu0
    %v452 = vadd.f32 %v392, %v451
    %v453 = vpop.f32.mrb[0].mxu0
    %454 = vdwg.mxu0
    %v455 = vpack.c.bf16 %v444, %v441
    %v456 = vpack.c.bf16 %v452, %v449
    %vm457 = vcmask 64512
    %v459 = vsel %vm457, %v307, 0
    %v462 = vsel %vm457, %v381, 0
    %464 = vmatprep.subr.bf16.mxu0 0
    %465 = vmatpush1.bf16.xpose.msra.mxu0 %v462
    %466 = vmatprep.subr.bf16.mxu0 0
    %467 = vmatpush1.bf16.xpose.msra.mxu0 0
    %468 = vmatprep.subr.bf16.mxu0 0
    %469 = vmatpush1.bf16.xpose.msra.mxu0 0
    %470 = vmatprep.subr.bf16.mxu0 0
    %471 = vmatpush1.bf16.xpose.msra.mxu0 0
    %472 = vmatprep.subr.bf16.mxu0 0
    %473 = vmatpush1.bf16.xpose.msra.mxu0 0
    %474 = vmatprep.subr.bf16.mxu0 0
    %475 = vmatpush1.bf16.xpose.msra.mxu0 0
    %476 = vmatprep.subr.bf16.mxu0 0
    %477 = vmatpush1.bf16.xpose.msra.mxu0 0
    %478 = vmatprep.subr.bf16.mxu0 0
    %479 = vmatpush1.bf16.xpose.msra.mxu0 0
    %480 = vmatprep.subr.bf16.mxu0 0
    %481 = vmatpush1.bf16.xpose.msra.mxu0 0
    %482 = vmatprep.subr.bf16.mxu0 0
    %483 = vmatpush1.bf16.xpose.msra.mxu0 0
    %484 = vmatprep.subr.bf16.mxu0 0
    %485 = vmatpush1.bf16.xpose.msra.mxu0 0
    %486 = vmatprep.subr.bf16.mxu0 0
    %487 = vmatpush1.bf16.xpose.msra.mxu0 0
    %488 = vmatprep.subr.bf16.mxu0 0
    %489 = vmatpush1.bf16.xpose.msra.mxu0 0
    %490 = vmatprep.subr.bf16.mxu0 0
    %491 = vmatpush1.bf16.xpose.msra.mxu0 0
    %492 = vmatprep.subr.bf16.mxu0 0
    %493 = vmatpush1.bf16.xpose.msra.mxu0 0
    %494 = vmatprep.subr.bf16.mxu0 0
    %495 = vmatpush1.bf16.xpose.msra.mxu0 0
    %496 = vmatprep.mubr.bf16.mxu0 0
    %497 = vmatmul.mubr.bf16.gmra.mrb[0].mxu0 %v459
    %v498 = vpop.f32.mrb[0].mxu0
    %v499 = vadd.f32 0.0, %v498
    %v500 = vpop.f32.mrb[0].mxu0
    %v501 = vpop.f32.mrb[0].mxu0
    %v502 = vadd.f32 0.0, %v501
    %v503 = vpop.f32.mrb[0].mxu0
    %504 = vdwg.mxu0
    %v506 = vsel %vm457, %v308, 0
    %v509 = vsel %vm457, %v382, 0
    %511 = vmatprep.subr.bf16.mxu0 0
    %512 = vmatpush1.bf16.xpose.msra.mxu0 %v509
    %513 = vmatprep.subr.bf16.mxu0 0
    %514 = vmatpush1.bf16.xpose.msra.mxu0 0
    %515 = vmatprep.subr.bf16.mxu0 0
    %516 = vmatpush1.bf16.xpose.msra.mxu0 0
    %517 = vmatprep.subr.bf16.mxu0 0
    %518 = vmatpush1.bf16.xpose.msra.mxu0 0
    %519 = vmatprep.subr.bf16.mxu0 0
    %520 = vmatpush1.bf16.xpose.msra.mxu0 0
    %521 = vmatprep.subr.bf16.mxu0 0
    %522 = vmatpush1.bf16.xpose.msra.mxu0 0
    %523 = vmatprep.subr.bf16.mxu0 0
    %524 = vmatpush1.bf16.xpose.msra.mxu0 0
    %525 = vmatprep.subr.bf16.mxu0 0
    %526 = vmatpush1.bf16.xpose.msra.mxu0 0
    %527 = vmatprep.subr.bf16.mxu0 0
    %528 = vmatpush1.bf16.xpose.msra.mxu0 0
    %529 = vmatprep.subr.bf16.mxu0 0
    %530 = vmatpush1.bf16.xpose.msra.mxu0 0
    %531 = vmatprep.subr.bf16.mxu0 0
    %532 = vmatpush1.bf16.xpose.msra.mxu0 0
    %533 = vmatprep.subr.bf16.mxu0 0
    %534 = vmatpush1.bf16.xpose.msra.mxu0 0
    %535 = vmatprep.subr.bf16.mxu0 0
    %536 = vmatpush1.bf16.xpose.msra.mxu0 0
    %537 = vmatprep.subr.bf16.mxu0 0
    %538 = vmatpush1.bf16.xpose.msra.mxu0 0
    %539 = vmatprep.subr.bf16.mxu0 0
    %540 = vmatpush1.bf16.xpose.msra.mxu0 0
    %541 = vmatprep.subr.bf16.mxu0 0
    %542 = vmatpush1.bf16.xpose.msra.mxu0 0
    %543 = vmatprep.mubr.bf16.mxu0 0
    %544 = vmatmul.mubr.bf16.gmra.mrb[0].mxu0 %v506
    %v545 = vpop.f32.mrb[0].mxu0
    %v546 = vadd.f32 0.0, %v545
    %v547 = vpop.f32.mrb[0].mxu0
    %v548 = vpop.f32.mrb[0].mxu0
    %v549 = vadd.f32 0.0, %v548
    %v550 = vpop.f32.mrb[0].mxu0
    %551 = vdwg.mxu0
    %v552 = vmul.f32 %v499, 0.35355338
    %v553 = vmul.f32 %v502, 0.35355338
    %v554 = vmul.f32 %v546, 0.35355338
    %v555 = vmul.f32 %v549, 0.35355338
    %vm556 = vcmask 130048
    %v557 = vsel %vm556, %v552, -inf
    %558 = vmax.xlane.f32.xlu0 %v557
    %v559 = vpop.xlane.xlu0 %558
    %v560 = vsel %vm556, %v553, -inf
    %561 = vmax.xlane.f32.xlu0 %v560
    %v562 = vpop.xlane.xlu0 %561
    %v563 = vsel %vm556, %v554, -inf
    %564 = vmax.xlane.f32.xlu0 %v563
    %v565 = vpop.xlane.xlu0 %564
    %v566 = vsel %vm556, %v555, -inf
    %567 = vmax.xlane.f32.xlu0 %v566
    %v568 = vpop.xlane.xlu0 %567
    %v569 = vsub.f32 %v552, %v559
    %v570 = vsub.f32 %v553, %v562
    %v571 = vsub.f32 %v554, %v565
    %v572 = vsub.f32 %v555, %v568
    %v573 = vmul.f32 %v569, 1.442695
    %v574 = vpow.pop %v573
    %v575 = vmul.f32 %v570, 1.442695
    %v576 = vpow.pop %v575
    %v577 = vmul.f32 %v571, 1.442695
    %v578 = vpow.pop %v577
    %v579 = vmul.f32 %v572, 1.442695
    %v580 = vpow.pop %v579
    %v581 = vsel %vm556, %v574, 0.0
    %582 = vadd.xlane.f32.xlu0 %v581
    %v583 = vpop.xlane.xlu0 %582
    %v584 = vsel %vm556, %v576, 0.0
    %585 = vadd.xlane.f32.xlu0 %v584
    %v586 = vpop.xlane.xlu0 %585
    %v587 = vsel %vm556, %v578, 0.0
    %588 = vadd.xlane.f32.xlu0 %v587
    %v589 = vpop.xlane.xlu0 %588
    %v590 = vsel %vm556, %v580, 0.0
    %591 = vadd.xlane.f32.xlu0 %v590
    %v592 = vpop.xlane.xlu0 %591
    %v593 = vrcp.pop %v583
    %v594 = vrcp.pop %v586
    %v595 = vrcp.pop %v589
    %v596 = vrcp.pop %v592
    %v597 = vmul.f32 %v574, %v593
    %v598 = vmul.f32 %v576, %v594
    %v599 = vmul.f32 %v578, %v595
    %v600 = vmul.f32 %v580, %v596
    %v601 = vpack.c.bf16 %v598, %v597
    %v602 = vpack.c.bf16 %v600, %v599
    %v604 = vsel %vm556, %v601, 0
    %606 = vmatprep.subr.bf16.mxu0 0
    %607 = vmatpush1.bf16.msra.mxu0 %v455
    %608 = vmatprep.subr.bf16.mxu0 0
    %609 = vmatpush1.bf16.msra.mxu0 0
    %610 = vmatprep.subr.bf16.mxu0 0
    %611 = vmatpush1.bf16.msra.mxu0 0
    %612 = vmatprep.subr.bf16.mxu0 0
    %613 = vmatpush1.bf16.msra.mxu0 0
    %614 = vmatprep.subr.bf16.mxu0 0
    %615 = vmatpush1.bf16.msra.mxu0 0
    %616 = vmatprep.subr.bf16.mxu0 0
    %617 = vmatpush1.bf16.msra.mxu0 0
    %618 = vmatprep.subr.bf16.mxu0 0
    %619 = vmatpush1.bf16.msra.mxu0 0
    %620 = vmatprep.subr.bf16.mxu0 0
    %621 = vmatpush1.bf16.msra.mxu0 0
    %622 = vmatprep.subr.bf16.mxu0 0
    %623 = vmatpush1.bf16.msra.mxu0 0
    %624 = vmatprep.subr.bf16.mxu0 0
    %625 = vmatpush1.bf16.msra.mxu0 0
    %626 = vmatprep.subr.bf16.mxu0 0
    %627 = vmatpush1.bf16.msra.mxu0 0
    %628 = vmatprep.subr.bf16.mxu0 0
    %629 = vmatpush1.bf16.msra.mxu0 0
    %630 = vmatprep.subr.bf16.mxu0 0
    %631 = vmatpush1.bf16.msra.mxu0 0
    %632 = vmatprep.subr.bf16.mxu0 0
    %633 = vmatpush1.bf16.msra.mxu0 0
    %634 = vmatprep.subr.bf16.mxu0 0
    %635 = vmatpush1.bf16.msra.mxu0 0
    %636 = vmatprep.subr.bf16.mxu0 0
    %637 = vmatpush1.bf16.msra.mxu0 0
    %638 = vmatprep.mubr.bf16.mxu0 0
    %639 = vmatmul.mubr.bf16.gmra.mrb[0].mxu0 %v604
    %v640 = vpop.f32.mrb[0].mxu0
    %v641 = vadd.f32 0.0, %v640
    %v642 = vpop.f32.mrb[0].mxu0
    %v643 = vpop.f32.mrb[0].mxu0
    %v644 = vadd.f32 0.0, %v643
    %v645 = vpop.f32.mrb[0].mxu0
    %646 = vdwg.mxu0
    %v648 = vsel %vm556, %v602, 0
    %650 = vmatprep.subr.bf16.mxu0 0
    %651 = vmatpush1.bf16.msra.mxu0 %v456
    %652 = vmatprep.subr.bf16.mxu0 0
    %653 = vmatpush1.bf16.msra.mxu0 0
    %654 = vmatprep.subr.bf16.mxu0 0
    %655 = vmatpush1.bf16.msra.mxu0 0
    %656 = vmatprep.subr.bf16.mxu0 0
    %657 = vmatpush1.bf16.msra.mxu0 0
    %658 = vmatprep.subr.bf16.mxu0 0
    %659 = vmatpush1.bf16.msra.mxu0 0
    %660 = vmatprep.subr.bf16.mxu0 0
    %661 = vmatpush1.bf16.msra.mxu0 0
    %662 = vmatprep.subr.bf16.mxu0 0
    %663 = vmatpush1.bf16.msra.mxu0 0
    %664 = vmatprep.subr.bf16.mxu0 0
    %665 = vmatpush1.bf16.msra.mxu0 0
    %666 = vmatprep.subr.bf16.mxu0 0
    %667 = vmatpush1.bf16.msra.mxu0 0
    %668 = vmatprep.subr.bf16.mxu0 0
    %669 = vmatpush1.bf16.msra.mxu0 0
    %670 = vmatprep.subr.bf16.mxu0 0
    %671 = vmatpush1.bf16.msra.mxu0 0
    %672 = vmatprep.subr.bf16.mxu0 0
    %673 = vmatpush1.bf16.msra.mxu0 0
    %674 = vmatprep.subr.bf16.mxu0 0
    %675 = vmatpush1.bf16.msra.mxu0 0
    %676 = vmatprep.subr.bf16.mxu0 0
    %677 = vmatpush1.bf16.msra.mxu0 0
    %678 = vmatprep.subr.bf16.mxu0 0
    %679 = vmatpush1.bf16.msra.mxu0 0
    %680 = vmatprep.subr.bf16.mxu0 0
    %681 = vmatpush1.bf16.msra.mxu0 0
    %682 = vmatprep.mubr.bf16.mxu0 0
    %683 = vmatmul.mubr.bf16.gmra.mrb[0].mxu0 %v648
    %v684 = vpop.f32.mrb[0].mxu0
    %v685 = vadd.f32 0.0, %v684
    %v686 = vpop.f32.mrb[0].mxu0
    %v687 = vpop.f32.mrb[0].mxu0
    %v688 = vadd.f32 0.0, %v687
    %v689 = vpop.f32.mrb[0].mxu0
    %690 = vdwg.mxu0
    %v691 = vpack.c.bf16 %v644, %v641
    %v692 = vpack.c.bf16 %v688, %v685
    %693 = vst.msk [vmem:[#allocation2] sm:$0xff] %vm457, %v691
    %694 = vst.msk [vmem:[#allocation2 + $0x8] sm:$0xff] %vm457, %v692
    %696 = vrot.lane.b32.xlu0 %v307, 120
    %v697 = vpop.permute.xlu0 %696
    %699 = vrot.lane.b32.xlu0 %v381, 120
    %v700 = vpop.permute.xlu0 %699
    %v702 = vsel %vm457, %v697, 0
    %v705 = vsel %vm457, %v700, 0
    %707 = vmatprep.subr.bf16.mxu0 0
    %708 = vmatpush1.bf16.xpose.msra.mxu0 %v705
    %709 = vmatprep.subr.bf16.mxu0 0
    %710 = vmatpush1.bf16.xpose.msra.mxu0 0
    %711 = vmatprep.subr.bf16.mxu0 0
    %712 = vmatpush1.bf16.xpose.msra.mxu0 0
    %713 = vmatprep.subr.bf16.mxu0 0
    %714 = vmatpush1.bf16.xpose.msra.mxu0 0
    %715 = vmatprep.subr.bf16.mxu0 0
    %716 = vmatpush1.bf16.xpose.msra.mxu0 0
    %717 = vmatprep.subr.bf16.mxu0 0
    %718 = vmatpush1.bf16.xpose.msra.mxu0 0
    %719 = vmatprep.subr.bf16.mxu0 0
    %720 = vmatpush1.bf16.xpose.msra.mxu0 0
    %721 = vmatprep.subr.bf16.mxu0 0
    %722 = vmatpush1.bf16.xpose.msra.mxu0 0
    %723 = vmatprep.subr.bf16.mxu0 0
    %724 = vmatpush1.bf16.xpose.msra.mxu0 0
    %725 = vmatprep.subr.bf16.mxu0 0
    %726 = vmatpush1.bf16.xpose.msra.mxu0 0
    %727 = vmatprep.subr.bf16.mxu0 0
    %728 = vmatpush1.bf16.xpose.msra.mxu0 0
    %729 = vmatprep.subr.bf16.mxu0 0
    %730 = vmatpush1.bf16.xpose.msra.mxu0 0
    %731 = vmatprep.subr.bf16.mxu0 0
    %732 = vmatpush1.bf16.xpose.msra.mxu0 0
    %733 = vmatprep.subr.bf16.mxu0 0
    %734 = vmatpush1.bf16.xpose.msra.mxu0 0
    %735 = vmatprep.subr.bf16.mxu0 0
    %736 = vmatpush1.bf16.xpose.msra.mxu0 0
    %737 = vmatprep.subr.bf16.mxu0 0
    %738 = vmatpush1.bf16.xpose.msra.mxu0 0
    %739 = vmatprep.mubr.bf16.mxu0 0
    %740 = vmatmul.mubr.bf16.gmra.mrb[0].mxu0 %v702
    %v741 = vpop.f32.mrb[0].mxu0
    %v742 = vadd.f32 0.0, %v741
    %v743 = vpop.f32.mrb[0].mxu0
    %v744 = vpop.f32.mrb[0].mxu0
    %v745 = vadd.f32 0.0, %v744
    %v746 = vpop.f32.mrb[0].mxu0
    %747 = vdwg.mxu0
    %749 = vrot.lane.b32.xlu0 %v308, 120
    %v750 = vpop.permute.xlu0 %749
    %752 = vrot.lane.b32.xlu0 %v382, 120
    %v753 = vpop.permute.xlu0 %752
    %v755 = vsel %vm457, %v750, 0
    %v758 = vsel %vm457, %v753, 0
    %760 = vmatprep.subr.bf16.mxu0 0
    %761 = vmatpush1.bf16.xpose.msra.mxu0 %v758
    %762 = vmatprep.subr.bf16.mxu0 0
    %763 = vmatpush1.bf16.xpose.msra.mxu0 0
    %764 = vmatprep.subr.bf16.mxu0 0
    %765 = vmatpush1.bf16.xpose.msra.mxu0 0
    %766 = vmatprep.subr.bf16.mxu0 0
    %767 = vmatpush1.bf16.xpose.msra.mxu0 0
    %768 = vmatprep.subr.bf16.mxu0 0
    %769 = vmatpush1.bf16.xpose.msra.mxu0 0
    %770 = vmatprep.subr.bf16.mxu0 0
    %771 = vmatpush1.bf16.xpose.msra.mxu0 0
    %772 = vmatprep.subr.bf16.mxu0 0
    %773 = vmatpush1.bf16.xpose.msra.mxu0 0
    %774 = vmatprep.subr.bf16.mxu0 0
    %775 = vmatpush1.bf16.xpose.msra.mxu0 0
    %776 = vmatprep.subr.bf16.mxu0 0
    %777 = vmatpush1.bf16.xpose.msra.mxu0 0
    %778 = vmatprep.subr.bf16.mxu0 0
    %779 = vmatpush1.bf16.xpose.msra.mxu0 0
    %780 = vmatprep.subr.bf16.mxu0 0
    %781 = vmatpush1.bf16.xpose.msra.mxu0 0
    %782 = vmatprep.subr.bf16.mxu0 0
    %783 = vmatpush1.bf16.xpose.msra.mxu0 0
    %784 = vmatprep.subr.bf16.mxu0 0
    %785 = vmatpush1.bf16.xpose.msra.mxu0 0
    %786 = vmatprep.subr.bf16.mxu0 0
    %787 = vmatpush1.bf16.xpose.msra.mxu0 0
    %788 = vmatprep.subr.bf16.mxu0 0
    %789 = vmatpush1.bf16.xpose.msra.mxu0 0
    %790 = vmatprep.subr.bf16.mxu0 0
    %791 = vmatpush1.bf16.xpose.msra.mxu0 0
    %792 = vmatprep.mubr.bf16.mxu0 0
    %793 = vmatmul.mubr.bf16.gmra.mrb[0].mxu0 %v755
    %v794 = vpop.f32.mrb[0].mxu0
    %v795 = vadd.f32 0.0, %v794
    %v796 = vpop.f32.mrb[0].mxu0
    %v797 = vpop.f32.mrb[0].mxu0
    %v798 = vadd.f32 0.0, %v797
    %v799 = vpop.f32.mrb[0].mxu0
    %800 = vdwg.mxu0
    %v801 = vmul.f32 %v742, 0.35355338
    %v802 = vmul.f32 %v745, 0.35355338
    %v803 = vmul.f32 %v795, 0.35355338
    %v804 = vmul.f32 %v798, 0.35355338
    %v805 = vsel %vm556, %v801, -inf
    %806 = vmax.xlane.f32.xlu0 %v805
    %v807 = vpop.xlane.xlu0 %806
    %v808 = vsel %vm556, %v802, -inf
    %809 = vmax.xlane.f32.xlu0 %v808
    %v810 = vpop.xlane.xlu0 %809
    %v811 = vsel %vm556, %v803, -inf
    %812 = vmax.xlane.f32.xlu0 %v811
    %v813 = vpop.xlane.xlu0 %812
    %v814 = vsel %vm556, %v804, -inf
    %815 = vmax.xlane.f32.xlu0 %v814
    %v816 = vpop.xlane.xlu0 %815
    %v817 = vsub.f32 %v801, %v807
    %v818 = vsub.f32 %v802, %v810
    %v819 = vsub.f32 %v803, %v813
    %v820 = vsub.f32 %v804, %v816
    %v821 = vmul.f32 %v817, 1.442695
    %v822 = vpow.pop %v821
    %v823 = vmul.f32 %v818, 1.442695
    %v824 = vpow.pop %v823
    %v825 = vmul.f32 %v819, 1.442695
    %v826 = vpow.pop %v825
    %v827 = vmul.f32 %v820, 1.442695
    %v828 = vpow.pop %v827
    %v829 = vsel %vm556, %v822, 0.0
    %830 = vadd.xlane.f32.xlu0 %v829
    %v831 = vpop.xlane.xlu0 %830
    %v832 = vsel %vm556, %v824, 0.0
    %833 = vadd.xlane.f32.xlu0 %v832
    %v834 = vpop.xlane.xlu0 %833
    %v835 = vsel %vm556, %v826, 0.0
    %836 = vadd.xlane.f32.xlu0 %v835
    %v837 = vpop.xlane.xlu0 %836
    %v838 = vsel %vm556, %v828, 0.0
    %839 = vadd.xlane.f32.xlu0 %v838
    %v840 = vpop.xlane.xlu0 %839
    %v841 = vrcp.pop %v831
    %v842 = vrcp.pop %v834
    %v843 = vrcp.pop %v837
    %v844 = vrcp.pop %v840
    %v845 = vmul.f32 %v822, %v841
    %v846 = vmul.f32 %v824, %v842
    %v847 = vmul.f32 %v826, %v843
    %v848 = vmul.f32 %v828, %v844
    %v849 = vpack.c.bf16 %v846, %v845
    %v850 = vpack.c.bf16 %v848, %v847
    %852 = vrot.lane.b32.xlu0 %v455, 120
    %v853 = vpop.permute.xlu0 %852
    %v856 = vsel %vm556, %v849, 0
    %858 = vmatprep.subr.bf16.mxu0 0
    %859 = vmatpush1.bf16.msra.mxu0 %v853
    %860 = vmatprep.subr.bf16.mxu0 0
    %861 = vmatpush1.bf16.msra.mxu0 0
    %862 = vmatprep.subr.bf16.mxu0 0
    %863 = vmatpush1.bf16.msra.mxu0 0
    %864 = vmatprep.subr.bf16.mxu0 0
    %865 = vmatpush1.bf16.msra.mxu0 0
    %866 = vmatprep.subr.bf16.mxu0 0
    %867 = vmatpush1.bf16.msra.mxu0 0
    %868 = vmatprep.subr.bf16.mxu0 0
    %869 = vmatpush1.bf16.msra.mxu0 0
    %870 = vmatprep.subr.bf16.mxu0 0
    %871 = vmatpush1.bf16.msra.mxu0 0
    %872 = vmatprep.subr.bf16.mxu0 0
    %873 = vmatpush1.bf16.msra.mxu0 0
    %874 = vmatprep.subr.bf16.mxu0 0
    %875 = vmatpush1.bf16.msra.mxu0 0
    %876 = vmatprep.subr.bf16.mxu0 0
    %877 = vmatpush1.bf16.msra.mxu0 0
    %878 = vmatprep.subr.bf16.mxu0 0
    %879 = vmatpush1.bf16.msra.mxu0 0
    %880 = vmatprep.subr.bf16.mxu0 0
    %881 = vmatpush1.bf16.msra.mxu0 0
    %882 = vmatprep.subr.bf16.mxu0 0
    %883 = vmatpush1.bf16.msra.mxu0 0
    %884 = vmatprep.subr.bf16.mxu0 0
    %885 = vmatpush1.bf16.msra.mxu0 0
    %886 = vmatprep.subr.bf16.mxu0 0
    %887 = vmatpush1.bf16.msra.mxu0 0
    %888 = vmatprep.subr.bf16.mxu0 0
    %889 = vmatpush1.bf16.msra.mxu0 0
    %890 = vmatprep.mubr.bf16.mxu0 0
    %891 = vmatmul.mubr.bf16.gmra.mrb[0].mxu0 %v856
    %v892 = vpop.f32.mrb[0].mxu0
    %v893 = vadd.f32 0.0, %v892
    %v894 = vpop.f32.mrb[0].mxu0
    %v895 = vpop.f32.mrb[0].mxu0
    %v896 = vadd.f32 0.0, %v895
    %v897 = vpop.f32.mrb[0].mxu0
    %898 = vdwg.mxu0
    %900 = vrot.lane.b32.xlu0 %v456, 120
    %v901 = vpop.permute.xlu0 %900
    %v904 = vsel %vm556, %v850, 0
    %906 = vmatprep.subr.bf16.mxu0 0
    %907 = vmatpush1.bf16.msra.mxu0 %v901
    %908 = vmatprep.subr.bf16.mxu0 0
    %909 = vmatpush1.bf16.msra.mxu0 0
    %910 = vmatprep.subr.bf16.mxu0 0
    %911 = vmatpush1.bf16.msra.mxu0 0
    %912 = vmatprep.subr.bf16.mxu0 0
    %913 = vmatpush1.bf16.msra.mxu0 0
    %914 = vmatprep.subr.bf16.mxu0 0
    %915 = vmatpush1.bf16.msra.mxu0 0
    %916 = vmatprep.subr.bf16.mxu0 0
    %917 = vmatpush1.bf16.msra.mxu0 0
    %918 = vmatprep.subr.bf16.mxu0 0
    %919 = vmatpush1.bf16.msra.mxu0 0
    %920 = vmatprep.subr.bf16.mxu0 0
    %921 = vmatpush1.bf16.msra.mxu0 0
    %922 = vmatprep.subr.bf16.mxu0 0
    %923 = vmatpush1.bf16.msra.mxu0 0
    %924 = vmatprep.subr.bf16.mxu0 0
    %925 = vmatpush1.bf16.msra.mxu0 0
    %926 = vmatprep.subr.bf16.mxu0 0
    %927 = vmatpush1.bf16.msra.mxu0 0
    %928 = vmatprep.subr.bf16.mxu0 0
    %929 = vmatpush1.bf16.msra.mxu0 0
    %930 = vmatprep.subr.bf16.mxu0 0
    %931 = vmatpush1.bf16.msra.mxu0 0
    %932 = vmatprep.subr.bf16.mxu0 0
    %933 = vmatpush1.bf16.msra.mxu0 0
    %934 = vmatprep.subr.bf16.mxu0 0
    %935 = vmatpush1.bf16.msra.mxu0 0
    %936 = vmatprep.subr.bf16.mxu0 0
    %937 = vmatpush1.bf16.msra.mxu0 0
    %938 = vmatprep.mubr.bf16.mxu0 0
    %939 = vmatmul.mubr.bf16.gmra.mrb[0].mxu0 %v904
    %v940 = vpop.f32.mrb[0].mxu0
    %v941 = vadd.f32 0.0, %v940
    %v942 = vpop.f32.mrb[0].mxu0
    %v943 = vpop.f32.mrb[0].mxu0
    %v944 = vadd.f32 0.0, %v943
    %v945 = vpop.f32.mrb[0].mxu0
    %946 = vdwg.mxu0
    %v947 = vpack.c.bf16 %v896, %v893
    %v948 = vpack.c.bf16 %v944, %v941
    %951 = vrot.lane.b32.xlu0 %v947, 8
    %v952 = vpop.permute.xlu0 %951
    %953 = vrot.lane.b32.xlu0 %v948, 8
    %v954 = vpop.permute.xlu0 %953
    %vm957 = vcmask 130112
    %958 = vst.msk [vmem:[#allocation2] sm:$0xff] %vm957, %v952
    %959 = vst.msk [vmem:[#allocation2 + $0x8] sm:$0xff] %vm957, %v954
    %960 = vrot.lane.b32.xlu0 %v307, 112
    %v961 = vpop.permute.xlu0 %960
    %962 = vrot.lane.b32.xlu0 %v381, 112
    %v963 = vpop.permute.xlu0 %962
    %v965 = vsel %vm457, %v961, 0
    %v968 = vsel %vm457, %v963, 0
    %970 = vmatprep.subr.bf16.mxu0 0
    %971 = vmatpush1.bf16.xpose.msra.mxu0 %v968
    %972 = vmatprep.subr.bf16.mxu0 0
    %973 = vmatpush1.bf16.xpose.msra.mxu0 0
    %974 = vmatprep.subr.bf16.mxu0 0
    %975 = vmatpush1.bf16.xpose.msra.mxu0 0
    %976 = vmatprep.subr.bf16.mxu0 0
    %977 = vmatpush1.bf16.xpose.msra.mxu0 0
    %978 = vmatprep.subr.bf16.mxu0 0
    %979 = vmatpush1.bf16.xpose.msra.mxu0 0
    %980 = vmatprep.subr.bf16.mxu0 0
    %981 = vmatpush1.bf16.xpose.msra.mxu0 0
    %982 = vmatprep.subr.bf16.mxu0 0
    %983 = vmatpush1.bf16.xpose.msra.mxu0 0
    %984 = vmatprep.subr.bf16.mxu0 0
    %985 = vmatpush1.bf16.xpose.msra.mxu0 0
    %986 = vmatprep.subr.bf16.mxu0 0
    %987 = vmatpush1.bf16.xpose.msra.mxu0 0
    %988 = vmatprep.subr.bf16.mxu0 0
    %989 = vmatpush1.bf16.xpose.msra.mxu0 0
    %990 = vmatprep.subr.bf16.mxu0 0
    %991 = vmatpush1.bf16.xpose.msra.mxu0 0
    %992 = vmatprep.subr.bf16.mxu0 0
    %993 = vmatpush1.bf16.xpose.msra.mxu0 0
    %994 = vmatprep.subr.bf16.mxu0 0
    %995 = vmatpush1.bf16.xpose.msra.mxu0 0
    %996 = vmatprep.subr.bf16.mxu0 0
    %997 = vmatpush1.bf16.xpose.msra.mxu0 0
    %998 = vmatprep.subr.bf16.mxu0 0
    %999 = vmatpush1.bf16.xpose.msra.mxu0 0
    %1000 = vmatprep.subr.bf16.mxu0 0
    %1001 = vmatpush1.bf16.xpose.msra.mxu0 0
    %1002 = vmatprep.mubr.bf16.mxu0 0
    %1003 = vmatmul.mubr.bf16.gmra.mrb[0].mxu0 %v965
    %v1004 = vpop.f32.mrb[0].mxu0
    %v1005 = vadd.f32 0.0, %v1004
    %v1006 = vpop.f32.mrb[0].mxu0
    %v1007 = vpop.f32.mrb[0].mxu0
    %v1008 = vadd.f32 0.0, %v1007
    %v1009 = vpop.f32.mrb[0].mxu0
    %1010 = vdwg.mxu0
    %1011 = vrot.lane.b32.xlu0 %v308, 112
    %v1012 = vpop.permute.xlu0 %1011
    %1013 = vrot.lane.b32.xlu0 %v382, 112
    %v1014 = vpop.permute.xlu0 %1013
    %v1016 = vsel %vm457, %v1012, 0
    %v1019 = vsel %vm457, %v1014, 0
    %1021 = vmatprep.subr.bf16.mxu0 0
    %1022 = vmatpush1.bf16.xpose.msra.mxu0 %v1019
    %1023 = vmatprep.subr.bf16.mxu0 0
    %1024 = vmatpush1.bf16.xpose.msra.mxu0 0
    %1025 = vmatprep.subr.bf16.mxu0 0
    %1026 = vmatpush1.bf16.xpose.msra.mxu0 0
    %1027 = vmatprep.subr.bf16.mxu0 0
    %1028 = vmatpush1.bf16.xpose.msra.mxu0 0
    %1029 = vmatprep.subr.bf16.mxu0 0
    %1030 = vmatpush1.bf16.xpose.msra.mxu0 0
    %1031 = vmatprep.subr.bf16.mxu0 0
    %1032 = vmatpush1.bf16.xpose.msra.mxu0 0
    %1033 = vmatprep.subr.bf16.mxu0 0
    %1034 = vmatpush1.bf16.xpose.msra.mxu0 0
    %1035 = vmatprep.subr.bf16.mxu0 0
    %1036 = vmatpush1.bf16.xpose.msra.mxu0 0
    %1037 = vmatprep.subr.bf16.mxu0 0
    %1038 = vmatpush1.bf16.xpose.msra.mxu0 0
    %1039 = vmatprep.subr.bf16.mxu0 0
    %1040 = vmatpush1.bf16.xpose.msra.mxu0 0
    %1041 = vmatprep.subr.bf16.mxu0 0
    %1042 = vmatpush1.bf16.xpose.msra.mxu0 0
    %1043 = vmatprep.subr.bf16.mxu0 0
    %1044 = vmatpush1.bf16.xpose.msra.mxu0 0
    %1045 = vmatprep.subr.bf16.mxu0 0
    %1046 = vmatpush1.bf16.xpose.msra.mxu0 0
    %1047 = vmatprep.subr.bf16.mxu0 0
    %1048 = vmatpush1.bf16.xpose.msra.mxu0 0
    %1049 = vmatprep.subr.bf16.mxu0 0
    %1050 = vmatpush1.bf16.xpose.msra.mxu0 0
    %1051 = vmatprep.subr.bf16.mxu0 0
    %1052 = vmatpush1.bf16.xpose.msra.mxu0 0
    %1053 = vmatprep.mubr.bf16.mxu0 0
    %1054 = vmatmul.mubr.bf16.gmra.mrb[0].mxu0 %v1016
    %v1055 = vpop.f32.mrb[0].mxu0
    %v1056 = vadd.f32 0.0, %v1055
    %v1057 = vpop.f32.mrb[0].mxu0
    %v1058 = vpop.f32.mrb[0].mxu0
    %v1059 = vadd.f32 0.0, %v1058
    %v1060 = vpop.f32.mrb[0].mxu0
    %1061 = vdwg.mxu0
    %v1062 = vmul.f32 %v1005, 0.35355338
    %v1063 = vmul.f32 %v1008, 0.35355338
    %v1064 = vmul.f32 %v1056, 0.35355338
    %v1065 = vmul.f32 %v1059, 0.35355338
    %v1066 = vsel %vm556, %v1062, -inf
    %1067 = vmax.xlane.f32.xlu0 %v1066
    %v1068 = vpop.xlane.xlu0 %1067
    %v1069 = vsel %vm556, %v1063, -inf
    %1070 = vmax.xlane.f32.xlu0 %v1069
    %v1071 = vpop.xlane.xlu0 %1070
    %v1072 = vsel %vm556, %v1064, -inf
    %1073 = vmax.xlane.f32.xlu0 %v1072
    %v1074 = vpop.xlane.xlu0 %1073
    %v1075 = vsel %vm556, %v1065, -inf
    %1076 = vmax.xlane.f32.xlu0 %v1075
    %v1077 = vpop.xlane.xlu0 %1076
    %v1078 = vsub.f32 %v1062, %v1068
    %v1079 = vsub.f32 %v1063, %v1071
    %v1080 = vsub.f32 %v1064, %v1074
    %v1081 = vsub.f32 %v1065, %v1077
    %v1082 = vmul.f32 %v1078, 1.442695
    %v1083 = vpow.pop %v1082
    %v1084 = vmul.f32 %v1079, 1.442695
    %v1085 = vpow.pop %v1084
    %v1086 = vmul.f32 %v1080, 1.442695
    %v1087 = vpow.pop %v1086
    %v1088 = vmul.f32 %v1081, 1.442695
    %v1089 = vpow.pop %v1088
    %v1090 = vsel %vm556, %v1083, 0.0
    %1091 = vadd.xlane.f32.xlu0 %v1090
    %v1092 = vpop.xlane.xlu0 %1091
    %v1093 = vsel %vm556, %v1085, 0.0
    %1094 = vadd.xlane.f32.xlu0 %v1093
    %v1095 = vpop.xlane.xlu0 %1094
    %v1096 = vsel %vm556, %v1087, 0.0
    %1097 = vadd.xlane.f32.xlu0 %v1096
    %v1098 = vpop.xlane.xlu0 %1097
    %v1099 = vsel %vm556, %v1089, 0.0
    %1100 = vadd.xlane.f32.xlu0 %v1099
    %v1101 = vpop.xlane.xlu0 %1100
    %v1102 = vrcp.pop %v1092
    %v1103 = vrcp.pop %v1095
    %v1104 = vrcp.pop %v1098
    %v1105 = vrcp.pop %v1101
    %v1106 = vmul.f32 %v1083, %v1102
    %v1107 = vmul.f32 %v1085, %v1103
    %v1108 = vmul.f32 %v1087, %v1104
    %v1109 = vmul.f32 %v1089, %v1105
    %v1110 = vpack.c.bf16 %v1107, %v1106
    %v1111 = vpack.c.bf16 %v1109, %v1108
    %1112 = vrot.lane.b32.xlu0 %v455, 112
    %v1113 = vpop.permute.xlu0 %1112
    %v1116 = vsel %vm556, %v1110, 0
    %1118 = vmatprep.subr.bf16.mxu0 0
    %1119 = vmatpush1.bf16.msra.mxu0 %v1113
    %1120 = vmatprep.subr.bf16.mxu0 0
    %1121 = vmatpush1.bf16.msra.mxu0 0
    %1122 = vmatprep.subr.bf16.mxu0 0
    %1123 = vmatpush1.bf16.msra.mxu0 0
    %1124 = vmatprep.subr.bf16.mxu0 0
    %1125 = vmatpush1.bf16.msra.mxu0 0
    %1126 = vmatprep.subr.bf16.mxu0 0
    %1127 = vmatpush1.bf16.msra.mxu0 0
    %1128 = vmatprep.subr.bf16.mxu0 0
    %1129 = vmatpush1.bf16.msra.mxu0 0
    %1130 = vmatprep.subr.bf16.mxu0 0
    %1131 = vmatpush1.bf16.msra.mxu0 0
    %1132 = vmatprep.subr.bf16.mxu0 0
    %1133 = vmatpush1.bf16.msra.mxu0 0
    %1134 = vmatprep.subr.bf16.mxu0 0
    %1135 = vmatpush1.bf16.msra.mxu0 0
    %1136 = vmatprep.subr.bf16.mxu0 0
    %1137 = vmatpush1.bf16.msra.mxu0 0
    %1138 = vmatprep.subr.bf16.mxu0 0
    %1139 = vmatpush1.bf16.msra.mxu0 0
    %1140 = vmatprep.subr.bf16.mxu0 0
    %1141 = vmatpush1.bf16.msra.mxu0 0
    %1142 = vmatprep.subr.bf16.mxu0 0
    %1143 = vmatpush1.bf16.msra.mxu0 0
    %1144 = vmatprep.subr.bf16.mxu0 0
    %1145 = vmatpush1.bf16.msra.mxu0 0
    %1146 = vmatprep.subr.bf16.mxu0 0
    %1147 = vmatpush1.bf16.msra.mxu0 0
    %1148 = vmatprep.subr.bf16.mxu0 0
    %1149 = vmatpush1.bf16.msra.mxu0 0
    %1150 = vmatprep.mubr.bf16.mxu0 0
    %1151 = vmatmul.mubr.bf16.gmra.mrb[0].mxu0 %v1116
    %v1152 = vpop.f32.mrb[0].mxu0
    %v1153 = vadd.f32 0.0, %v1152
    %v1154 = vpop.f32.mrb[0].mxu0
    %v1155 = vpop.f32.mrb[0].mxu0
    %v1156 = vadd.f32 0.0, %v1155
    %v1157 = vpop.f32.mrb[0].mxu0
    %1158 = vdwg.mxu0
    %1159 = vrot.lane.b32.xlu0 %v456, 112
    %v1160 = vpop.permute.xlu0 %1159
    %v1163 = vsel %vm556, %v1111, 0
    %1165 = vmatprep.subr.bf16.mxu0 0
    %1166 = vmatpush1.bf16.msra.mxu0 %v1160
    %1167 = vmatprep.subr.bf16.mxu0 0
    %1168 = vmatpush1.bf16.msra.mxu0 0
    %1169 = vmatprep.subr.bf16.mxu0 0
    %1170 = vmatpush1.bf16.msra.mxu0 0
    %1171 = vmatprep.subr.bf16.mxu0 0
    %1172 = vmatpush1.bf16.msra.mxu0 0
    %1173 = vmatprep.subr.bf16.mxu0 0
    %1174 = vmatpush1.bf16.msra.mxu0 0
    %1175 = vmatprep.subr.bf16.mxu0 0
    %1176 = vmatpush1.bf16.msra.mxu0 0
    %1177 = vmatprep.subr.bf16.mxu0 0
    %1178 = vmatpush1.bf16.msra.mxu0 0
    %1179 = vmatprep.subr.bf16.mxu0 0
    %1180 = vmatpush1.bf16.msra.mxu0 0
    %1181 = vmatprep.subr.bf16.mxu0 0
    %1182 = vmatpush1.bf16.msra.mxu0 0
    %1183 = vmatprep.subr.bf16.mxu0 0
    %1184 = vmatpush1.bf16.msra.mxu0 0
    %1185 = vmatprep.subr.bf16.mxu0 0
    %1186 = vmatpush1.bf16.msra.mxu0 0
    %1187 = vmatprep.subr.bf16.mxu0 0
    %1188 = vmatpush1.bf16.msra.mxu0 0
    %1189 = vmatprep.subr.bf16.mxu0 0
    %1190 = vmatpush1.bf16.msra.mxu0 0
    %1191 = vmatprep.subr.bf16.mxu0 0
    %1192 = vmatpush1.bf16.msra.mxu0 0
    %1193 = vmatprep.subr.bf16.mxu0 0
    %1194 = vmatpush1.bf16.msra.mxu0 0
    %1195 = vmatprep.subr.bf16.mxu0 0
    %1196 = vmatpush1.bf16.msra.mxu0 0
    %1197 = vmatprep.mubr.bf16.mxu0 0
    %1198 = vmatmul.mubr.bf16.gmra.mrb[0].mxu0 %v1163
    %v1199 = vpop.f32.mrb[0].mxu0
    %v1200 = vadd.f32 0.0, %v1199
    %v1201 = vpop.f32.mrb[0].mxu0
    %v1202 = vpop.f32.mrb[0].mxu0
    %v1203 = vadd.f32 0.0, %v1202
    %v1204 = vpop.f32.mrb[0].mxu0
    %1205 = vdwg.mxu0
    %v1206 = vpack.c.bf16 %v1156, %v1153
    %v1207 = vpack.c.bf16 %v1203, %v1200
    %1210 = vrot.lane.b32.xlu0 %v1206, 16
    %v1211 = vpop.permute.xlu0 %1210
    %1212 = vrot.lane.b32.xlu0 %v1207, 16
    %v1213 = vpop.permute.xlu0 %1212
    %vm1216 = vcmask 195712
    %1217 = vst.msk [vmem:[#allocation2] sm:$0xff] %vm1216, %v1211
    %1218 = vst.msk [vmem:[#allocation2 + $0x8] sm:$0xff] %vm1216, %v1213
    %1219 = vrot.lane.b32.xlu0 %v307, 104
    %v1220 = vpop.permute.xlu0 %1219
    %1221 = vrot.lane.b32.xlu0 %v381, 104
    %v1222 = vpop.permute.xlu0 %1221
    %v1224 = vsel %vm457, %v1220, 0
    %v1227 = vsel %vm457, %v1222, 0
    %1229 = vmatprep.subr.bf16.mxu0 0
    %1230 = vmatpush1.bf16.xpose.msra.mxu0 %v1227
    %1231 = vmatprep.subr.bf16.mxu0 0
    %1232 = vmatpush1.bf16.xpose.msra.mxu0 0
    %1233 = vmatprep.subr.bf16.mxu0 0
    %1234 = vmatpush1.bf16.xpose.msra.mxu0 0
    %1235 = vmatprep.subr.bf16.mxu0 0
    %1236 = vmatpush1.bf16.xpose.msra.mxu0 0
    %1237 = vmatprep.subr.bf16.mxu0 0
    %1238 = vmatpush1.bf16.xpose.msra.mxu0 0
    %1239 = vmatprep.subr.bf16.mxu0 0
    %1240 = vmatpush1.bf16.xpose.msra.mxu0 0
    %1241 = vmatprep.subr.bf16.mxu0 0
    %1242 = vmatpush1.bf16.xpose.msra.mxu0 0
    %1243 = vmatprep.subr.bf16.mxu0 0
    %1244 = vmatpush1.bf16.xpose.msra.mxu0 0
    %1245 = vmatprep.subr.bf16.mxu0 0
    %1246 = vmatpush1.bf16.xpose.msra.mxu0 0
    %1247 = vmatprep.subr.bf16.mxu0 0
    %1248 = vmatpush1.bf16.xpose.msra.mxu0 0
    %1249 = vmatprep.subr.bf16.mxu0 0
    %1250 = vmatpush1.bf16.xpose.msra.mxu0 0
    %1251 = vmatprep.subr.bf16.mxu0 0
    %1252 = vmatpush1.bf16.xpose.msra.mxu0 0
    %1253 = vmatprep.subr.bf16.mxu0 0
    %1254 = vmatpush1.bf16.xpose.msra.mxu0 0
    %1255 = vmatprep.subr.bf16.mxu0 0
    %1256 = vmatpush1.bf16.xpose.msra.mxu0 0
    %1257 = vmatprep.subr.bf16.mxu0 0
    %1258 = vmatpush1.bf16.xpose.msra.mxu0 0
    %1259 = vmatprep.subr.bf16.mxu0 0
    %1260 = vmatpush1.bf16.xpose.msra.mxu0 0
    %1261 = vmatprep.mubr.bf16.mxu0 0
    %1262 = vmatmul.mubr.bf16.gmra.mrb[0].mxu0 %v1224
    %v1263 = vpop.f32.mrb[0].mxu0
    %v1264 = vadd.f32 0.0, %v1263
    %v1265 = vpop.f32.mrb[0].mxu0
    %v1266 = vpop.f32.mrb[0].mxu0
    %v1267 = vadd.f32 0.0, %v1266
    %v1268 = vpop.f32.mrb[0].mxu0
    %1269 = vdwg.mxu0
    %1270 = vrot.lane.b32.xlu0 %v308, 104
    %v1271 = vpop.permute.xlu0 %1270
    %1272 = vrot.lane.b32.xlu0 %v382, 104
    %v1273 = vpop.permute.xlu0 %1272
    %v1275 = vsel %vm457, %v1271, 0
    %v1278 = vsel %vm457, %v1273, 0
    %1280 = vmatprep.subr.bf16.mxu0 0
    %1281 = vmatpush1.bf16.xpose.msra.mxu0 %v1278
    %1282 = vmatprep.subr.bf16.mxu0 0
    %1283 = vmatpush1.bf16.xpose.msra.mxu0 0
    %1284 = vmatprep.subr.bf16.mxu0 0
    %1285 = vmatpush1.bf16.xpose.msra.mxu0 0
    %1286 = vmatprep.subr.bf16.mxu0 0
    %1287 = vmatpush1.bf16.xpose.msra.mxu0 0
    %1288 = vmatprep.subr.bf16.mxu0 0
    %1289 = vmatpush1.bf16.xpose.msra.mxu0 0
    %1290 = vmatprep.subr.bf16.mxu0 0
    %1291 = vmatpush1.bf16.xpose.msra.mxu0 0
    %1292 = vmatprep.subr.bf16.mxu0 0
    %1293 = vmatpush1.bf16.xpose.msra.mxu0 0
    %1294 = vmatprep.subr.bf16.mxu0 0
    %1295 = vmatpush1.bf16.xpose.msra.mxu0 0
    %1296 = vmatprep.subr.bf16.mxu0 0
    %1297 = vmatpush1.bf16.xpose.msra.mxu0 0
    %1298 = vmatprep.subr.bf16.mxu0 0
    %1299 = vmatpush1.bf16.xpose.msra.mxu0 0
    %1300 = vmatprep.subr.bf16.mxu0 0
    %1301 = vmatpush1.bf16.xpose.msra.mxu0 0
    %1302 = vmatprep.subr.bf16.mxu0 0
    %1303 = vmatpush1.bf16.xpose.msra.mxu0 0
    %1304 = vmatprep.subr.bf16.mxu0 0
    %1305 = vmatpush1.bf16.xpose.msra.mxu0 0
    %1306 = vmatprep.subr.bf16.mxu0 0
    %1307 = vmatpush1.bf16.xpose.msra.mxu0 0
    %1308 = vmatprep.subr.bf16.mxu0 0
    %1309 = vmatpush1.bf16.xpose.msra.mxu0 0
    %1310 = vmatprep.subr.bf16.mxu0 0
    %1311 = vmatpush1.bf16.xpose.msra.mxu0 0
    %1312 = vmatprep.mubr.bf16.mxu0 0
    %1313 = vmatmul.mubr.bf16.gmra.mrb[0].mxu0 %v1275
    %v1314 = vpop.f32.mrb[0].mxu0
    %v1315 = vadd.f32 0.0, %v1314
    %v1316 = vpop.f32.mrb[0].mxu0
    %v1317 = vpop.f32.mrb[0].mxu0
    %v1318 = vadd.f32 0.0, %v1317
    %v1319 = vpop.f32.mrb[0].mxu0
    %1320 = vdwg.mxu0
    %v1321 = vmul.f32 %v1264, 0.35355338
    %v1322 = vmul.f32 %v1267, 0.35355338
    %v1323 = vmul.f32 %v1315, 0.35355338
    %v1324 = vmul.f32 %v1318, 0.35355338
    %v1325 = vsel %vm556, %v1321, -inf
    %1326 = vmax.xlane.f32.xlu0 %v1325
    %v1327 = vpop.xlane.xlu0 %1326
    %v1328 = vsel %vm556, %v1322, -inf
    %1329 = vmax.xlane.f32.xlu0 %v1328
    %v1330 = vpop.xlane.xlu0 %1329
    %v1331 = vsel %vm556, %v1323, -inf
    %1332 = vmax.xlane.f32.xlu0 %v1331
    %v1333 = vpop.xlane.xlu0 %1332
    %v1334 = vsel %vm556, %v1324, -inf
    %1335 = vmax.xlane.f32.xlu0 %v1334
    %v1336 = vpop.xlane.xlu0 %1335
    %v1337 = vsub.f32 %v1321, %v1327
    %v1338 = vsub.f32 %v1322, %v1330
    %v1339 = vsub.f32 %v1323, %v1333
    %v1340 = vsub.f32 %v1324, %v1336
    %v1341 = vmul.f32 %v1337, 1.442695
    %v1342 = vpow.pop %v1341
    %v1343 = vmul.f32 %v1338, 1.442695
    %v1344 = vpow.pop %v1343
    %v1345 = vmul.f32 %v1339, 1.442695
    %v1346 = vpow.pop %v1345
    %v1347 = vmul.f32 %v1340, 1.442695
    %v1348 = vpow.pop %v1347
    %v1349 = vsel %vm556, %v1342, 0.0
    %1350 = vadd.xlane.f32.xlu0 %v1349
    %v1351 = vpop.xlane.xlu0 %1350
    %v1352 = vsel %vm556, %v1344, 0.0
    %1353 = vadd.xlane.f32.xlu0 %v1352
    %v1354 = vpop.xlane.xlu0 %1353
    %v1355 = vsel %vm556, %v1346, 0.0
    %1356 = vadd.xlane.f32.xlu0 %v1355
    %v1357 = vpop.xlane.xlu0 %1356
    %v1358 = vsel %vm556, %v1348, 0.0
    %1359 = vadd.xlane.f32.xlu0 %v1358
    %v1360 = vpop.xlane.xlu0 %1359
    %v1361 = vrcp.pop %v1351
    %v1362 = vrcp.pop %v1354
    %v1363 = vrcp.pop %v1357
    %v1364 = vrcp.pop %v1360
    %v1365 = vmul.f32 %v1342, %v1361
    %v1366 = vmul.f32 %v1344, %v1362
    %v1367 = vmul.f32 %v1346, %v1363
    %v1368 = vmul.f32 %v1348, %v1364
    %v1369 = vpack.c.bf16 %v1366, %v1365
    %v1370 = vpack.c.bf16 %v1368, %v1367
    %1371 = vrot.lane.b32.xlu0 %v455, 104
    %v1372 = vpop.permute.xlu0 %1371
    %v1375 = vsel %vm556, %v1369, 0
    %1377 = vmatprep.subr.bf16.mxu0 0
    %1378 = vmatpush1.bf16.msra.mxu0 %v1372
    %1379 = vmatprep.subr.bf16.mxu0 0
    %1380 = vmatpush1.bf16.msra.mxu0 0
    %1381 = vmatprep.subr.bf16.mxu0 0
    %1382 = vmatpush1.bf16.msra.mxu0 0
    %1383 = vmatprep.subr.bf16.mxu0 0
    %1384 = vmatpush1.bf16.msra.mxu0 0
    %1385 = vmatprep.subr.bf16.mxu0 0
    %1386 = vmatpush1.bf16.msra.mxu0 0
    %1387 = vmatprep.subr.bf16.mxu0 0
    %1388 = vmatpush1.bf16.msra.mxu0 0
    %1389 = vmatprep.subr.bf16.mxu0 0
    %1390 = vmatpush1.bf16.msra.mxu0 0
    %1391 = vmatprep.subr.bf16.mxu0 0
    %1392 = vmatpush1.bf16.msra.mxu0 0
    %1393 = vmatprep.subr.bf16.mxu0 0
    %1394 = vmatpush1.bf16.msra.mxu0 0
    %1395 = vmatprep.subr.bf16.mxu0 0
    %1396 = vmatpush1.bf16.msra.mxu0 0
    %1397 = vmatprep.subr.bf16.mxu0 0
    %1398 = vmatpush1.bf16.msra.mxu0 0
    %1399 = vmatprep.subr.bf16.mxu0 0
    %1400 = vmatpush1.bf16.msra.mxu0 0
    %1401 = vmatprep.subr.bf16.mxu0 0
    %1402 = vmatpush1.bf16.msra.mxu0 0
    %1403 = vmatprep.subr.bf16.mxu0 0
    %1404 = vmatpush1.bf16.msra.mxu0 0
    %1405 = vmatprep.subr.bf16.mxu0 0
    %1406 = vmatpush1.bf16.msra.mxu0 0
    %1407 = vmatprep.subr.bf16.mxu0 0
    %1408 = vmatpush1.bf16.msra.mxu0 0
    %1409 = vmatprep.mubr.bf16.mxu0 0
    %1410 = vmatmul.mubr.bf16.gmra.mrb[0].mxu0 %v1375
    %v1411 = vpop.f32.mrb[0].mxu0
    %v1412 = vadd.f32 0.0, %v1411
    %v1413 = vpop.f32.mrb[0].mxu0
    %v1414 = vpop.f32.mrb[0].mxu0
    %v1415 = vadd.f32 0.0, %v1414
    %v1416 = vpop.f32.mrb[0].mxu0
    %1417 = vdwg.mxu0
    %1418 = vrot.lane.b32.xlu0 %v456, 104
    %v1419 = vpop.permute.xlu0 %1418
    %v1422 = vsel %vm556, %v1370, 0
    %1424 = vmatprep.subr.bf16.mxu0 0
    %1425 = vmatpush1.bf16.msra.mxu0 %v1419
    %1426 = vmatprep.subr.bf16.mxu0 0
    %1427 = vmatpush1.bf16.msra.mxu0 0
    %1428 = vmatprep.subr.bf16.mxu0 0
    %1429 = vmatpush1.bf16.msra.mxu0 0
    %1430 = vmatprep.subr.bf16.mxu0 0
    %1431 = vmatpush1.bf16.msra.mxu0 0
    %1432 = vmatprep.subr.bf16.mxu0 0
    %1433 = vmatpush1.bf16.msra.mxu0 0
    %1434 = vmatprep.subr.bf16.mxu0 0
    %1435 = vmatpush1.bf16.msra.mxu0 0
    %1436 = vmatprep.subr.bf16.mxu0 0
    %1437 = vmatpush1.bf16.msra.mxu0 0
    %1438 = vmatprep.subr.bf16.mxu0 0
    %1439 = vmatpush1.bf16.msra.mxu0 0
    %1440 = vmatprep.subr.bf16.mxu0 0
    %1441 = vmatpush1.bf16.msra.mxu0 0
    %1442 = vmatprep.subr.bf16.mxu0 0
    %1443 = vmatpush1.bf16.msra.mxu0 0
    %1444 = vmatprep.subr.bf16.mxu0 0
    %1445 = vmatpush1.bf16.msra.mxu0 0
    %1446 = vmatprep.subr.bf16.mxu0 0
    %1447 = vmatpush1.bf16.msra.mxu0 0
    %1448 = vmatprep.subr.bf16.mxu0 0
    %1449 = vmatpush1.bf16.msra.mxu0 0
    %1450 = vmatprep.subr.bf16.mxu0 0
    %1451 = vmatpush1.bf16.msra.mxu0 0
    %1452 = vmatprep.subr.bf16.mxu0 0
    %1453 = vmatpush1.bf16.msra.mxu0 0
    %1454 = vmatprep.subr.bf16.mxu0 0
    %1455 = vmatpush1.bf16.msra.mxu0 0
    %1456 = vmatprep.mubr.bf16.mxu0 0
    %1457 = vmatmul.mubr.bf16.gmra.mrb[0].mxu0 %v1422
    %v1458 = vpop.f32.mrb[0].mxu0
    %v1459 = vadd.f32 0.0, %v1458
    %v1460 = vpop.f32.mrb[0].mxu0
    %v1461 = vpop.f32.mrb[0].mxu0
    %v1462 = vadd.f32 0.0, %v1461
    %v1463 = vpop.f32.mrb[0].mxu0
    %1464 = vdwg.mxu0
    %v1465 = vpack.c.bf16 %v1415, %v1412
    %v1466 = vpack.c.bf16 %v1462, %v1459
    %1469 = vrot.lane.b32.xlu0 %v1465, 24
    %v1470 = vpop.permute.xlu0 %1469
    %1471 = vrot.lane.b32.xlu0 %v1466, 24
    %v1472 = vpop.permute.xlu0 %1471
    %vm1475 = vcmask 261312
    %1476 = vst.msk [vmem:[#allocation2] sm:$0xff] %vm1475, %v1470
    %1477 = vst.msk [vmem:[#allocation2 + $0x8] sm:$0xff] %vm1475, %v1472
    %v1478 = vld [vmem:[#allocation2] sm:$0xff]
    %v1479 = vld [vmem:[#allocation2 + $0x8] sm:$0xff]
    %v1480 = vld [vmem:[%s9] sm:$0xf]
    %v1481 = vld [vmem:[%s9 + $0x4] sm:$0xf]
    %v1482 = vld [vmem:[%s9 + $0x8] sm:$0xf]
    %v1483 = vld [vmem:[%s9 + $0xc] sm:$0xf]
    %v1484 = vld [vmem:[#allocation11] sm:$0x1]
    %v1486 = vlaneseq
    %v1487 = vshrl.u32 %v1486, 7
    %v1488 = vsub.s32 0, %v1487
    %v1489 = vrot.slane %v1484, %v1488
    %v1495 = vunpack.c.l.b16 %v1480
    %v1496 = vunpack.c.l.b16 %v1481
    %v1497 = vunpack.c.l.b16 %v1482
    %v1498 = vunpack.c.l.b16 %v1483
    %v1499 = vpack.c.b16 %v1496, %v1495
    %v1500 = vpack.c.b16 %v1498, %v1497
    %v1504 = vsel %vm145, %v1478, 0
    %v1507 = vsel %vm145, %v1479, 0
    %1509 = vmatprep.subr.bf16.mxu0 0
    %1510 = vmatpush1.bf16.msra.mxu0 %v1499
    %1511 = vmatprep.subr.bf16.mxu0 0
    %1512 = vmatpush1.bf16.msra.mxu0 %v1500
    %1513 = vmatprep.subr.bf16.mxu0 0
    %1514 = vmatpush1.bf16.msra.mxu0 0
    %1515 = vmatprep.subr.bf16.mxu0 0
    %1516 = vmatpush1.bf16.msra.mxu0 0
    %1517 = vmatprep.subr.bf16.mxu0 0
    %1518 = vmatpush1.bf16.msra.mxu0 0
    %1519 = vmatprep.subr.bf16.mxu0 0
    %1520 = vmatpush1.bf16.msra.mxu0 0
    %1521 = vmatprep.subr.bf16.mxu0 0
    %1522 = vmatpush1.bf16.msra.mxu0 0
    %1523 = vmatprep.subr.bf16.mxu0 0
    %1524 = vmatpush1.bf16.msra.mxu0 0
    %1525 = vmatprep.subr.bf16.mxu0 0
    %1526 = vmatpush1.bf16.msra.mxu0 0
    %1527 = vmatprep.subr.bf16.mxu0 0
    %1528 = vmatpush1.bf16.msra.mxu0 0
    %1529 = vmatprep.subr.bf16.mxu0 0
    %1530 = vmatpush1.bf16.msra.mxu0 0
    %1531 = vmatprep.subr.bf16.mxu0 0
    %1532 = vmatpush1.bf16.msra.mxu0 0
    %1533 = vmatprep.subr.bf16.mxu0 0
    %1534 = vmatpush1.bf16.msra.mxu0 0
    %1535 = vmatprep.subr.bf16.mxu0 0
    %1536 = vmatpush1.bf16.msra.mxu0 0
    %1537 = vmatprep.subr.bf16.mxu0 0
    %1538 = vmatpush1.bf16.msra.mxu0 0
    %1539 = vmatprep.subr.bf16.mxu0 0
    %1540 = vmatpush1.bf16.msra.mxu0 0
    %1541 = vmatprep.mubr.bf16.mxu0 0
    %1542 = vmatmul.mubr.bf16.gmra.mrb[0].mxu0 %v1504
    %v1543 = vpop.f32.mrb[0].mxu0
    %v1544 = vadd.f32 %v1489, %v1543
    %v1545 = vpop.f32.mrb[0].mxu0
    %v1546 = vpop.f32.mrb[0].mxu0
    %v1547 = vadd.f32 %v1489, %v1546
    %v1548 = vpop.f32.mrb[0].mxu0
    %1549 = vmatprep.mubr.bf16.mxu0 0
    %1550 = vmatmul.mubr.bf16.gmra.mrb[0].mxu0 %v1507
    %v1551 = vpop.f32.mrb[0].mxu0
    %v1552 = vadd.f32 %v1489, %v1551
    %v1553 = vpop.f32.mrb[0].mxu0
    %v1554 = vpop.f32.mrb[0].mxu0
    %v1555 = vadd.f32 %v1489, %v1554
    %v1556 = vpop.f32.mrb[0].mxu0
    %1557 = vdwg.mxu0
    %v1558 = vadd.f32 %v139, %v1544
    %v1559 = vadd.f32 %v140, %v1547
    %v1560 = vadd.f32 %v141, %v1552
    %v1561 = vadd.f32 %v142, %v1555
    %v1562 = vld [vmem:[#allocation12] sm:$0x1]
    %v1563 = vld [vmem:[#allocation14] sm:$0x1]
    %v1564 = vsel %vm145, %v1558, 0.0
    %1565 = vadd.xlane.f32.xlu0 %v1564
    %v1566 = vpop.xlane.xlu0 %1565
    %v1567 = vsel %vm145, %v1559, 0.0
    %1568 = vadd.xlane.f32.xlu0 %v1567
    %v1569 = vpop.xlane.xlu0 %1568
    %v1570 = vsel %vm145, %v1560, 0.0
    %1571 = vadd.xlane.f32.xlu0 %v1570
    %v1572 = vpop.xlane.xlu0 %1571
    %v1573 = vsel %vm145, %v1561, 0.0
    %1574 = vadd.xlane.f32.xlu0 %v1573
    %v1575 = vpop.xlane.xlu0 %1574
    %v1576 = vmul.f32 %v1566, %v158
    %v1577 = vmul.f32 %v1569, %v158
    %v1578 = vmul.f32 %v1572, %v158
    %v1579 = vmul.f32 %v1575, %v158
    %v1580 = vmul.f32 %v1558, %v1558
    %v1581 = vmul.f32 %v1559, %v1559
    %v1582 = vmul.f32 %v1560, %v1560
    %v1583 = vmul.f32 %v1561, %v1561
    %v1584 = vsel %vm145, %v1580, 0.0
    %1585 = vadd.xlane.f32.xlu0 %v1584
    %v1586 = vpop.xlane.xlu0 %1585
    %v1587 = vsel %vm145, %v1581, 0.0
    %1588 = vadd.xlane.f32.xlu0 %v1587
    %v1589 = vpop.xlane.xlu0 %1588
    %v1590 = vsel %vm145, %v1582, 0.0
    %1591 = vadd.xlane.f32.xlu0 %v1590
    %v1592 = vpop.xlane.xlu0 %1591
    %v1593 = vsel %vm145, %v1583, 0.0
    %1594 = vadd.xlane.f32.xlu0 %v1593
    %v1595 = vpop.xlane.xlu0 %1594
    %v1596 = vmul.f32 %v1586, %v158
    %v1597 = vmul.f32 %v1589, %v158
    %v1598 = vmul.f32 %v1592, %v158
    %v1599 = vmul.f32 %v1595, %v158
    %v1600 = vmul.f32 %v1576, %v1576
    %v1601 = vmul.f32 %v1577, %v1577
    %v1602 = vmul.f32 %v1578, %v1578
    %v1603 = vmul.f32 %v1579, %v1579
    %v1604 = vsub.f32 %v1596, %v1600
    %v1605 = vsub.f32 %v1597, %v1601
    %v1606 = vsub.f32 %v1598, %v1602
    %v1607 = vsub.f32 %v1599, %v1603
    %v1608 = vsub.f32 %v1558, %v1576
    %v1609 = vsub.f32 %v1559, %v1577
    %v1610 = vsub.f32 %v1560, %v1578
    %v1611 = vsub.f32 %v1561, %v1579
    %v1612 = vadd.f32 %v1604, 1e-05
    %v1613 = vadd.f32 %v1605, 1e-05
    %v1614 = vadd.f32 %v1606, 1e-05
    %v1615 = vadd.f32 %v1607, 1e-05
    %v1616 = vrsqrt.pop %v1612
    %v1617 = vrsqrt.pop %v1613
    %v1618 = vrsqrt.pop %v1614
    %v1619 = vrsqrt.pop %v1615
    %v1620 = vmul.f32 %v1608, %v1616
    %v1621 = vmul.f32 %v1609, %v1617
    %v1622 = vmul.f32 %v1610, %v1618
    %v1623 = vmul.f32 %v1611, %v1619
    %v1625 = vlaneseq
    %v1626 = vshrl.u32 %v1625, 7
    %v1627 = vsub.s32 0, %v1626
    %v1628 = vrot.slane %v1562, %v1627
    %v1630 = vmul.f32 %v1620, %v1628
    %v1631 = vmul.f32 %v1621, %v1628
    %v1632 = vmul.f32 %v1622, %v1628
    %v1633 = vmul.f32 %v1623, %v1628
    %v1635 = vlaneseq
    %v1636 = vshrl.u32 %v1635, 7
    %v1637 = vsub.s32 0, %v1636
    %v1638 = vrot.slane %v1563, %v1637
    %v1640 = vadd.f32 %v1630, %v1638
    %v1641 = vadd.f32 %v1631, %v1638
    %v1642 = vadd.f32 %v1632, %v1638
    %v1643 = vadd.f32 %v1633, %v1638
    %v1644 = vpack.c.bf16 %v1641, %v1640
    %v1645 = vpack.c.bf16 %v1643, %v1642
    %v1646 = vld [vmem:[%s13] sm:$0xf]
    %v1647 = vld [vmem:[%s13 + $0x4] sm:$0xf]
    %v1648 = vld [vmem:[%s13 + $0x8] sm:$0xf]
    %v1649 = vld [vmem:[%s13 + $0xc] sm:$0xf]
    %v1650 = vld [vmem:[%s14] sm:$0x1]
    %v1652 = vlaneseq
    %v1653 = vshrl.u32 %v1652, 7
    %v1654 = vsub.s32 0, %v1653
    %v1655 = vrot.slane %v1650, %v1654
    %v1661 = vunpack.c.l.b16 %v1646
    %v1662 = vunpack.c.l.b16 %v1647
    %v1663 = vunpack.c.l.b16 %v1648
    %v1664 = vunpack.c.l.b16 %v1649
    %v1665 = vpack.c.b16 %v1662, %v1661
    %v1666 = vpack.c.b16 %v1664, %v1663
    %v1670 = vsel %vm145, %v1644, 0
    %v1673 = vsel %vm145, %v1645, 0
    %1675 = vmatprep.subr.bf16.mxu0 0
    %1676 = vmatpush1.bf16.msra.mxu0 %v1665
    %1677 = vmatprep.subr.bf16.mxu0 0
    %1678 = vmatpush1.bf16.msra.mxu0 %v1666
    %1679 = vmatprep.subr.bf16.mxu0 0
    %1680 = vmatpush1.bf16.msra.mxu0 0
    %1681 = vmatprep.subr.bf16.mxu0 0
    %1682 = vmatpush1.bf16.msra.mxu0 0
    %1683 = vmatprep.subr.bf16.mxu0 0
    %1684 = vmatpush1.bf16.msra.mxu0 0
    %1685 = vmatprep.subr.bf16.mxu0 0
    %1686 = vmatpush1.bf16.msra.mxu0 0
    %1687 = vmatprep.subr.bf16.mxu0 0
    %1688 = vmatpush1.bf16.msra.mxu0 0
    %1689 = vmatprep.subr.bf16.mxu0 0
    %1690 = vmatpush1.bf16.msra.mxu0 0
    %1691 = vmatprep.subr.bf16.mxu0 0
    %1692 = vmatpush1.bf16.msra.mxu0 0
    %1693 = vmatprep.subr.bf16.mxu0 0
    %1694 = vmatpush1.bf16.msra.mxu0 0
    %1695 = vmatprep.subr.bf16.mxu0 0
    %1696 = vmatpush1.bf16.msra.mxu0 0
    %1697 = vmatprep.subr.bf16.mxu0 0
    %1698 = vmatpush1.bf16.msra.mxu0 0
    %1699 = vmatprep.subr.bf16.mxu0 0
    %1700 = vmatpush1.bf16.msra.mxu0 0
    %1701 = vmatprep.subr.bf16.mxu0 0
    %1702 = vmatpush1.bf16.msra.mxu0 0
    %1703 = vmatprep.subr.bf16.mxu0 0
    %1704 = vmatpush1.bf16.msra.mxu0 0
    %1705 = vmatprep.subr.bf16.mxu0 0
    %1706 = vmatpush1.bf16.msra.mxu0 0
    %1707 = vmatprep.mubr.bf16.mxu0 0
    %1708 = vmatmul.mubr.bf16.gmra.mrb[0].mxu0 %v1670
    %v1709 = vpop.f32.mrb[0].mxu0
    %v1710 = vadd.f32 %v1655, %v1709
    %v1711 = vpop.f32.mrb[0].mxu0
    %v1712 = vpop.f32.mrb[0].mxu0
    %v1713 = vadd.f32 %v1655, %v1712
    %v1714 = vpop.f32.mrb[0].mxu0
    %1715 = vmatprep.mubr.bf16.mxu0 0
    %1716 = vmatmul.mubr.bf16.gmra.mrb[0].mxu0 %v1673
    %v1717 = vpop.f32.mrb[0].mxu0
    %v1718 = vadd.f32 %v1655, %v1717
    %v1719 = vpop.f32.mrb[0].mxu0
    %v1720 = vpop.f32.mrb[0].mxu0
    %v1721 = vadd.f32 %v1655, %v1720
    %v1722 = vpop.f32.mrb[0].mxu0
    %1723 = vdwg.mxu0
    %v1724 = vmul.f32 %v1710, 0.5
    %v1725 = vmul.f32 %v1713, 0.5
    %v1726 = vmul.f32 %v1718, 0.5
    %v1727 = vmul.f32 %v1721, 0.5
    %v1728 = vmul.f32 %v1710, 0.70710677
    %v1729 = vmul.f32 %v1713, 0.70710677
    %v1730 = vmul.f32 %v1718, 0.70710677
    %v1731 = vmul.f32 %v1721, 0.70710677
    %v1732 = verf.f32.pop %v1728
    %v1733 = verf.f32.pop %v1729
    %v1734 = verf.f32.pop %v1730
    %v1735 = verf.f32.pop %v1731
    %v1736 = vadd.f32 %v1732, 1.0
    %v1737 = vadd.f32 %v1733, 1.0
    %v1738 = vadd.f32 %v1734, 1.0
    %v1739 = vadd.f32 %v1735, 1.0
    %v1740 = vmul.f32 %v1724, %v1736
    %v1741 = vmul.f32 %v1725, %v1737
    %v1742 = vmul.f32 %v1726, %v1738
    %v1743 = vmul.f32 %v1727, %v1739
    %v1744 = vpack.c.bf16 %v1741, %v1740
    %v1745 = vpack.c.bf16 %v1743, %v1742
    %v1746 = vld [vmem:[%s15] sm:$0xf]
    %v1747 = vld [vmem:[%s15 + $0x4] sm:$0xf]
    %v1748 = vld [vmem:[%s15 + $0x8] sm:$0xf]
    %v1749 = vld [vmem:[%s15 + $0xc] sm:$0xf]
    %v1750 = vld [vmem:[%s15 + $0x10] sm:$0xf]
    %v1751 = vld [vmem:[%s15 + $0x14] sm:$0xf]
    %v1752 = vld [vmem:[%s15 + $0x18] sm:$0xf]
    %v1753 = vld [vmem:[%s15 + $0x1c] sm:$0xf]
    %v1754 = vld [vmem:[%s15 + $0x20] sm:$0xf]
    %v1755 = vld [vmem:[%s15 + $0x24] sm:$0xf]
    %v1756 = vld [vmem:[%s15 + $0x28] sm:$0xf]
    %v1757 = vld [vmem:[%s15 + $0x2c] sm:$0xf]
    %v1758 = vld [vmem:[%s15 + $0x30] sm:$0xf]
    %v1759 = vld [vmem:[%s15 + $0x34] sm:$0xf]
    %v1760 = vld [vmem:[%s15 + $0x38] sm:$0xf]
    %v1761 = vld [vmem:[%s15 + $0x3c] sm:$0xf]
    %v1762 = vld [vmem:[%s16] sm:$0x1]
    %v1764 = vlaneseq
    %v1765 = vshrl.u32 %v1764, 7
    %v1766 = vsub.s32 0, %v1765
    %v1767 = vrot.slane %v1762, %v1766
    %v1785 = vunpack.c.l.b16 %v1746
    %v1786 = vunpack.c.l.b16 %v1747
    %v1787 = vunpack.c.l.b16 %v1748
    %v1788 = vunpack.c.l.b16 %v1749
    %v1789 = vunpack.c.l.b16 %v1750
    %v1790 = vunpack.c.l.b16 %v1751
    %v1791 = vunpack.c.l.b16 %v1752
    %v1792 = vunpack.c.l.b16 %v1753
    %v1793 = vunpack.c.l.b16 %v1754
    %v1794 = vunpack.c.l.b16 %v1755
    %v1795 = vunpack.c.l.b16 %v1756
    %v1796 = vunpack.c.l.b16 %v1757
    %v1797 = vunpack.c.l.b16 %v1758
    %v1798 = vunpack.c.l.b16 %v1759
    %v1799 = vunpack.c.l.b16 %v1760
    %v1800 = vunpack.c.l.b16 %v1761
    %v1801 = vpack.c.b16 %v1786, %v1785
    %v1802 = vpack.c.b16 %v1788, %v1787
    %v1803 = vpack.c.b16 %v1790, %v1789
    %v1804 = vpack.c.b16 %v1792, %v1791
    %v1805 = vpack.c.b16 %v1794, %v1793
    %v1806 = vpack.c.b16 %v1796, %v1795
    %v1807 = vpack.c.b16 %v1798, %v1797
    %v1808 = vpack.c.b16 %v1800, %v1799
    %1817 = vmatprep.subr.bf16.mxu0 0
    %1818 = vmatpush1.bf16.msra.mxu0 %v1801
    %1819 = vmatprep.subr.bf16.mxu0 0
    %1820 = vmatpush1.bf16.msra.mxu0 %v1802
    %1821 = vmatprep.subr.bf16.mxu0 0
    %1822 = vmatpush1.bf16.msra.mxu0 %v1803
    %1823 = vmatprep.subr.bf16.mxu0 0
    %1824 = vmatpush1.bf16.msra.mxu0 %v1804
    %1825 = vmatprep.subr.bf16.mxu0 0
    %1826 = vmatpush1.bf16.msra.mxu0 %v1805
    %1827 = vmatprep.subr.bf16.mxu0 0
    %1828 = vmatpush1.bf16.msra.mxu0 %v1806
    %1829 = vmatprep.subr.bf16.mxu0 0
    %1830 = vmatpush1.bf16.msra.mxu0 %v1807
    %1831 = vmatprep.subr.bf16.mxu0 0
    %1832 = vmatpush1.bf16.msra.mxu0 %v1808
    %1833 = vmatprep.subr.bf16.mxu0 0
    %1834 = vmatpush1.bf16.msra.mxu0 0
    %1835 = vmatprep.subr.bf16.mxu0 0
    %1836 = vmatpush1.bf16.msra.mxu0 0
    %1837 = vmatprep.subr.bf16.mxu0 0
    %1838 = vmatpush1.bf16.msra.mxu0 0
    %1839 = vmatprep.subr.bf16.mxu0 0
    %1840 = vmatpush1.bf16.msra.mxu0 0
    %1841 = vmatprep.subr.bf16.mxu0 0
    %1842 = vmatpush1.bf16.msra.mxu0 0
    %1843 = vmatprep.subr.bf16.mxu0 0
    %1844 = vmatpush1.bf16.msra.mxu0 0
    %1845 = vmatprep.subr.bf16.mxu0 0
    %1846 = vmatpush1.bf16.msra.mxu0 0
    %1847 = vmatprep.subr.bf16.mxu0 0
    %1848 = vmatpush1.bf16.msra.mxu0 0
    %1849 = vmatprep.mubr.bf16.mxu0 0
    %1850 = vmatmul.mubr.bf16.gmra.mrb[0].mxu0 %v1744
    %v1851 = vpop.f32.mrb[0].mxu0
    %v1852 = vadd.f32 %v1767, %v1851
    %v1853 = vpop.f32.mrb[0].mxu0
    %v1854 = vpop.f32.mrb[0].mxu0
    %v1855 = vadd.f32 %v1767, %v1854
    %v1856 = vpop.f32.mrb[0].mxu0
    %1857 = vmatprep.mubr.bf16.mxu0 0
    %1858 = vmatmul.mubr.bf16.gmra.mrb[0].mxu0 %v1745
    %v1859 = vpop.f32.mrb[0].mxu0
    %v1860 = vadd.f32 %v1767, %v1859
    %v1861 = vpop.f32.mrb[0].mxu0
    %v1862 = vpop.f32.mrb[0].mxu0
    %v1863 = vadd.f32 %v1767, %v1862
    %v1864 = vpop.f32.mrb[0].mxu0
    %1865 = vdwg.mxu0
    %v1866 = vadd.f32 %v1558, %v1852
    %v1867 = vadd.f32 %v1559, %v1855
    %v1868 = vadd.f32 %v1560, %v1860
    %v1869 = vadd.f32 %v1561, %v1863
    %1870 = vst.msk [vmem:[#allocation15] sm:$0xff] %vm145, %v1866
    %1871 = vst.msk [vmem:[#allocation15 + $0x8] sm:$0xff] %vm145, %v1867
    %1872 = vst.msk [vmem:[#allocation15 + $0x10] sm:$0xff] %vm145, %v1868
    %1873 = vst.msk [vmem:[#allocation15 + $0x18] sm:$0xff] %vm145, %v1869
    // Predicated region
    $region98: #{tpu_custom_call.1} parent=1 // pred_check
      _
    $region99: #{tpu_custom_call.1} parent=1 // pred_check_branch
      %1875 = sbr.rel (0) target = $region101
    $region100: #{tpu_custom_call.1} parent=1 // pred_region
      %s1877 = ssub.s32 512, 512
      %1878 = vsyncadd [#allocation5], %s1877
      %s1879 = sshll.u32 [#allocation15], 4
      %s1880 = int_to_ptr.vmem [resolvable:$true] %s1879
      %1885 = dma.vmem_to_hbm [thread:$0]  %s1880, 512, %s17, [#allocation5], 128, 128, 8
    $region101: #{tpu_custom_call.1} parent=1 // pred_fallthru
      _
    // Predicated region
    $region102: #{tpu_custom_call.1} parent=1 // pred_check
      _
    $region103: #{tpu_custom_call.1} parent=1 // pred_check_branch
      %1887 = sbr.rel (0) target = $region105
    $region104: #{tpu_custom_call.1} parent=1 // pred_region
      %1888 = dma.done [#allocation5], 512
    $region105: #{tpu_custom_call.1} parent=1 // pred_fallthru
      _
    %1889 = vsyncpa [#allocation4], 1
    %1890 = vsyncpa [#allocation7], 1
    %1891 = vsyncpa [#allocation10], 1
    %1892 = vsyncpa [#allocation13], 1
    %1893 = vsyncpa [#allocation5], 1

</llo_original>
